<compile_context>
chip_gen: v7x
topology: tpu7x:2x2x1
jax: 0.10.0
libtpu: 0.0.40
codegen_flags: <defaults>
</compile_context>

<pallas_src>
import functools

import jax
import jax.numpy as jnp
from jax.experimental import pallas as pl
from jax.experimental.pallas import tpu as pltpu


def _mlflat_kernel(xT_ref, win_ref, bin_ref, wblk_ref, bblk_ref,
                   wout_ref, bout_ref, o_ref, *, num_blocks, scaling, half):
    """Feature-major body.

    xT_ref  : (784, TILE_B)       bf16  -- batch on lanes
    win_ref : (width, 784)        bf16  -- PyTorch layout (out, in)
    bin_ref : (width, 1)          f32
    wblk_ref: (L, width, width)   bf16
    bblk_ref: (L, width, 1)       f32
    wout_ref: (nclasses, width)   bf16
    bout_ref: (nclasses, 1)       f32
    o_ref   : (nclasses, TILE_B)  f32   -- lane-dense output
    """
    # linear_in: (width, 784) @ (784, TILE_B) -> (width, TILE_B), f32 accum.
    h = jnp.dot(win_ref[...], xT_ref[...],
                preferred_element_type=jnp.float32) + bin_ref[...]

    # Split into two independent lane streams (each a multiple of 128 lanes)
    # and interleave them through the serially-dependent block chain.
    ha = h[:, :half]
    hb = h[:, half:]

    # Statically unrolled residual chain; wblk_ref[i]/bblk_ref[i] are static
    # (zero-cost) ref views.  Matmul operands bf16, elementwise math f32.
    for i in range(num_blocks):
        w = wblk_ref[i]                      # (width, width) bf16
        b = bblk_ref[i]                      # (width, 1)     f32
        oa = jnp.dot(w, ha.astype(w.dtype),
                     preferred_element_type=jnp.float32) + b
        ob = jnp.dot(w, hb.astype(w.dtype),
                     preferred_element_type=jnp.float32) + b
        ha = scaling * jnp.maximum(oa, 0.0) + ha
        hb = scaling * jnp.maximum(ob, 0.0) + hb

    # linear_out + final relu, written as two lane-aligned static slices.
    wout = wout_ref[...]
    bout = bout_ref[...]
    za = jnp.dot(wout, ha.astype(wout.dtype),
                 preferred_element_type=jnp.float32) + bout
    zb = jnp.dot(wout, hb.astype(wout.dtype),
                 preferred_element_type=jnp.float32) + bout
    o_ref[:, :half] = jnp.maximum(za, 0.0)
    o_ref[:, half:] = jnp.maximum(zb, 0.0)


def mlflat_forward(x, w_in, b_in, w_blk, b_blk, w_out, b_out, *,
                   scaling=1.0, tile_b=256, param_dtype=jnp.bfloat16):
    """x: (B, 784) f32. Weights in PyTorch layout:
         w_in (width, 784), b_in (width,), w_blk (L, width, width),
         b_blk (L, width), w_out (nclasses, width), b_out (nclasses,)."""
    assert tile_b % 256 == 0, "tile_b must be a multiple of 256 (two 128-lane streams)"
    B, d_in = x.shape
    L, width, _ = w_blk.shape
    nclasses = w_out.shape[0]

    n_tiles = (B + tile_b - 1) // tile_b
    b_pad = n_tiles * tile_b

    # Wrapper glue: transpose x once (feature-major), pad batch to a tile
    # multiple, cast matmul operands to bf16, keep biases f32 column vectors.
    xT = jnp.transpose(x).astype(param_dtype)          # (784, B)
    if b_pad != B:
        xT = jnp.pad(xT, ((0, 0), (0, b_pad - B)))     # (784, b_pad)

    win = w_in.astype(param_dtype)                     # (width, 784)
    wblk = w_blk.astype(param_dtype)                   # (L, width, width)
    wout = w_out.astype(param_dtype)                   # (nclasses, width)
    bin_c = b_in.reshape(width, 1).astype(jnp.float32)
    bblk_c = b_blk.reshape(L, width, 1).astype(jnp.float32)
    bout_c = b_out.reshape(nclasses, 1).astype(jnp.float32)

    kernel = functools.partial(_mlflat_kernel, num_blocks=L,
                               scaling=float(scaling), half=tile_b // 2)

    grid_spec = pltpu.PrefetchScalarGridSpec(
        num_scalar_prefetch=0,
        grid=(n_tiles,),
        in_specs=[
            # x tile marches along the batch (lane) axis; weights/biases are
            # VMEM residents (same block index every grid step -> loaded once).
            pl.BlockSpec((d_in, tile_b), lambda i: (0, i)),
            pl.BlockSpec((width, d_in), lambda i: (0, 0)),
            pl.BlockSpec((width, 1), lambda i: (0, 0)),
            pl.BlockSpec((L, width, width), lambda i: (0, 0, 0)),
            pl.BlockSpec((L, width, 1), lambda i: (0, 0, 0)),
            pl.BlockSpec((nclasses, width), lambda i: (0, 0)),
            pl.BlockSpec((nclasses, 1), lambda i: (0, 0)),
        ],
        out_specs=pl.BlockSpec((nclasses, tile_b), lambda i: (0, i)),
    )

    outT = pl.pallas_call(
        kernel,
        out_shape=jax.ShapeDtypeStruct((nclasses, b_pad), jnp.float32),
        grid_spec=grid_spec,
        compiler_params=pltpu.CompilerParams(
            dimension_semantics=("parallel",)),
    )(xT, win, bin_c, wblk, bblk_c, wout, bout_c)

    # (nclasses, b_pad) -> (B, nclasses)
    return jnp.transpose(outT[:, :B])


def mlflat_reference(x, w_in, b_in, w_blk, b_blk, w_out, b_out, *,
                     scaling=1.0, param_dtype=jnp.float32):
    """Pure-JAX reference with the same precision policy as the kernel
    (matmul operands in `param_dtype`, f32 accumulation/elementwise)."""
    h = jnp.dot(x.astype(param_dtype), w_in.astype(param_dtype).T,
                preferred_element_type=jnp.float32) + b_in
    for i in range(w_blk.shape[0]):
        out = jnp.dot(h.astype(param_dtype), w_blk[i].astype(param_dtype).T,
                      preferred_element_type=jnp.float32) + b_blk[i]
        h = scaling * jnp.maximum(out, 0.0) + h
    z = jnp.dot(h.astype(param_dtype), w_out.astype(param_dtype).T,
                preferred_element_type=jnp.float32) + b_out
    return jnp.maximum(z, 0.0)


if __name__ == "__main__":
    # Small, forward-consistent shapes: batch=8 flattened-MNIST rows,
    # width=10, nclasses=10, 8 residual blocks, scaling=1.0.
    B, D_IN, WIDTH, NCLASSES, L = 8, 784, 10, 10, 8
    SCALING = 1.0

    key = jax.random.PRNGKey(0)
    kx, k1, k2, k3, k4, k5, k6 = jax.random.split(key, 7)

    x = jax.random.normal(kx, (B, D_IN), dtype=jnp.float32)

    # Deterministic parameter init (shapes as in the PyTorch module).
    bound_in = 1.0 / jnp.sqrt(jnp.float32(D_IN))
    w_in = jax.random.uniform(k1, (WIDTH, D_IN), jnp.float32, -bound_in, bound_in)
    b_in = jax.random.uniform(k2, (WIDTH,), jnp.float32, -bound_in, bound_in)

    xavier_std = jnp.sqrt(2.0 / (WIDTH + WIDTH))
    w_blk = xavier_std * jax.random.normal(k3, (L, WIDTH, WIDTH), jnp.float32)
    bound_blk = 1.0 / jnp.sqrt(jnp.float32(WIDTH))
    b_blk = jax.random.uniform(k4, (L, WIDTH), jnp.float32, -bound_blk, bound_blk)

    bound_out = 1.0 / jnp.sqrt(jnp.float32(WIDTH))
    w_out = jax.random.uniform(k5, (NCLASSES, WIDTH), jnp.float32,
                               -bound_out, bound_out)
    b_out = jax.random.uniform(k6, (NCLASSES,), jnp.float32,
                               -bound_out, bound_out)

    out = mlflat_forward(x, w_in, b_in, w_blk, b_blk, w_out, b_out,
                         scaling=SCALING)
    out = jax.block_until_ready(out)
    assert out.shape == (B, NCLASSES)

    # Matched-precision reference (bf16 matmul operands, f32 accumulation).
    ref_bf16 = mlflat_reference(x, w_in, b_in, w_blk, b_blk, w_out, b_out,
                                scaling=SCALING, param_dtype=jnp.bfloat16)
    assert jnp.allclose(out, ref_bf16, atol=1e-3, rtol=1e-3), \
        "mismatch vs matched-precision reference"

    # Loose sanity check against the full-f32 reference (bf16 operand error only).
    ref_f32 = mlflat_reference(x, w_in, b_in, w_blk, b_blk, w_out, b_out,
                               scaling=SCALING, param_dtype=jnp.float32)
    assert jnp.allclose(out, ref_f32, atol=1e-1, rtol=1e-1), \
        "mismatch vs f32 reference beyond bf16 operand tolerance"

    print("KERNEL_OK")
</pallas_src>

<mosaic_0001>
module attributes {stable_mosaic.version = 11 : i64} {
  func.func @_mlflat_kernel(%arg0: i32, %arg1: memref<784x256xbf16, #tpu.memory_space<vmem>>, %arg2: memref<10x784xbf16, #tpu.memory_space<vmem>>, %arg3: memref<10x1xf32, #tpu.memory_space<vmem>>, %arg4: memref<8x10x10xbf16, #tpu.memory_space<vmem>>, %arg5: memref<8x10x1xf32, #tpu.memory_space<vmem>>, %arg6: memref<10x10xbf16, #tpu.memory_space<vmem>>, %arg7: memref<10x1xf32, #tpu.memory_space<vmem>>, %arg8: memref<10x256xf32, #tpu.memory_space<vmem>>) attributes {dimension_semantics = [#tpu.dimension_semantics<parallel>], iteration_bounds = array<i64: 1>, scalar_prefetch = 0 : i64, scratch_operands = 0 : i64, tpu.core_type = #tpu.core_type<tc>, window_params = [{transform_indices = @transform_0, window_bounds = array<i64: 784, 256>}, {pipeline_mode = #tpu.pipeline_mode<synchronous>, transform_indices = @transform_1, window_bounds = array<i64: 10, 784>}, {pipeline_mode = #tpu.pipeline_mode<synchronous>, transform_indices = @transform_2, window_bounds = array<i64: 10, 1>}, {pipeline_mode = #tpu.pipeline_mode<synchronous>, transform_indices = @transform_3, window_bounds = array<i64: 8, 10, 10>}, {pipeline_mode = #tpu.pipeline_mode<synchronous>, transform_indices = @transform_4, window_bounds = array<i64: 8, 10, 1>}, {pipeline_mode = #tpu.pipeline_mode<synchronous>, transform_indices = @transform_5, window_bounds = array<i64: 10, 10>}, {pipeline_mode = #tpu.pipeline_mode<synchronous>, transform_indices = @transform_6, window_bounds = array<i64: 10, 1>}, {transform_indices = @transform_7, window_bounds = array<i64: 10, 256>}]} {
    %c0 = arith.constant 0 : index
    %c0_0 = arith.constant 0 : index
    %0 = vector.load %arg2[%c0, %c0_0] : memref<10x784xbf16, #tpu.memory_space<vmem>>, vector<10x784xbf16>
    %c0_1 = arith.constant 0 : index
    %c0_2 = arith.constant 0 : index
    %1 = vector.load %arg1[%c0_1, %c0_2] : memref<784x256xbf16, #tpu.memory_space<vmem>>, vector<784x256xbf16>
    %cst = arith.constant dense<0.000000e+00> : vector<10x256xf32>
    %2 = tpu.matmul %0, %1, %cst {dimension_numbers = #tpu.dot_dimension_numbers<[1], [0], [0], [1], [0, 0, 1, 1], [], []>} : vector<10x784xbf16>, vector<784x256xbf16>, vector<10x256xf32> -> vector<10x256xf32>
    %c0_3 = arith.constant 0 : index
    %c0_4 = arith.constant 0 : index
    %3 = vector.load %arg3[%c0_3, %c0_4] : memref<10x1xf32, #tpu.memory_space<vmem>>, vector<10x1xf32>
    %4 = vector.broadcast %3 : vector<10x1xf32> to vector<10x256xf32>
    %5 = arith.addf %2, %4 : vector<10x256xf32>
    %6 = vector.extract_strided_slice %5 {offsets = [0, 0], sizes = [10, 128], strides = [1, 1]} : vector<10x256xf32> to vector<10x128xf32>
    %7 = vector.extract_strided_slice %5 {offsets = [0, 128], sizes = [10, 128], strides = [1, 1]} : vector<10x256xf32> to vector<10x128xf32>
    %c0_5 = arith.constant 0 : index
    %c0_6 = arith.constant 0 : index
    %c0_7 = arith.constant 0 : index
    %8 = vector.load %arg4[%c0_5, %c0_6, %c0_7] : memref<8x10x10xbf16, #tpu.memory_space<vmem>>, vector<1x10x10xbf16>
    %9 = vector.shape_cast %8 : vector<1x10x10xbf16> to vector<10x10xbf16>
    %c0_8 = arith.constant 0 : index
    %c0_9 = arith.constant 0 : index
    %c0_10 = arith.constant 0 : index
    %10 = vector.load %arg5[%c0_8, %c0_9, %c0_10] : memref<8x10x1xf32, #tpu.memory_space<vmem>>, vector<1x10x1xf32>
    %11 = vector.shape_cast %10 : vector<1x10x1xf32> to vector<10x1xf32>
    %12 = arith.truncf %6 : vector<10x128xf32> to vector<10x128xbf16>
    %cst_11 = arith.constant dense<0.000000e+00> : vector<10x128xf32>
    %13 = tpu.matmul %9, %12, %cst_11 {dimension_numbers = #tpu.dot_dimension_numbers<[1], [0], [0], [1], [0, 0, 1, 1], [], []>} : vector<10x10xbf16>, vector<10x128xbf16>, vector<10x128xf32> -> vector<10x128xf32>
    %14 = vector.broadcast %11 : vector<10x1xf32> to vector<10x128xf32>
    %15 = arith.addf %13, %14 : vector<10x128xf32>
    %16 = arith.truncf %7 : vector<10x128xf32> to vector<10x128xbf16>
    %cst_12 = arith.constant dense<0.000000e+00> : vector<10x128xf32>
    %17 = tpu.matmul %9, %16, %cst_12 {dimension_numbers = #tpu.dot_dimension_numbers<[1], [0], [0], [1], [0, 0, 1, 1], [], []>} : vector<10x10xbf16>, vector<10x128xbf16>, vector<10x128xf32> -> vector<10x128xf32>
    %18 = vector.broadcast %11 : vector<10x1xf32> to vector<10x128xf32>
    %19 = arith.addf %17, %18 : vector<10x128xf32>
    %cst_13 = arith.constant 0.000000e+00 : f32
    %20 = vector.broadcast %cst_13 : f32 to vector<10x128xf32>
    %21 = arith.maximumf %15, %20 : vector<10x128xf32>
    %cst_14 = arith.constant 1.000000e+00 : f32
    %22 = vector.broadcast %cst_14 : f32 to vector<10x128xf32>
    %23 = arith.mulf %22, %21 : vector<10x128xf32>
    %24 = arith.addf %23, %6 : vector<10x128xf32>
    %cst_15 = arith.constant 0.000000e+00 : f32
    %25 = vector.broadcast %cst_15 : f32 to vector<10x128xf32>
    %26 = arith.maximumf %19, %25 : vector<10x128xf32>
    %cst_16 = arith.constant 1.000000e+00 : f32
    %27 = vector.broadcast %cst_16 : f32 to vector<10x128xf32>
    %28 = arith.mulf %27, %26 : vector<10x128xf32>
    %29 = arith.addf %28, %7 : vector<10x128xf32>
    %c1 = arith.constant 1 : index
    %c0_17 = arith.constant 0 : index
    %c0_18 = arith.constant 0 : index
    %30 = vector.load %arg4[%c1, %c0_17, %c0_18] : memref<8x10x10xbf16, #tpu.memory_space<vmem>>, vector<1x10x10xbf16>
    %31 = vector.shape_cast %30 : vector<1x10x10xbf16> to vector<10x10xbf16>
    %c1_19 = arith.constant 1 : index
    %c0_20 = arith.constant 0 : index
    %c0_21 = arith.constant 0 : index
    %32 = vector.load %arg5[%c1_19, %c0_20, %c0_21] : memref<8x10x1xf32, #tpu.memory_space<vmem>>, vector<1x10x1xf32>
    %33 = vector.shape_cast %32 : vector<1x10x1xf32> to vector<10x1xf32>
    %34 = arith.truncf %24 : vector<10x128xf32> to vector<10x128xbf16>
    %cst_22 = arith.constant dense<0.000000e+00> : vector<10x128xf32>
    %35 = tpu.matmul %31, %34, %cst_22 {dimension_numbers = #tpu.dot_dimension_numbers<[1], [0], [0], [1], [0, 0, 1, 1], [], []>} : vector<10x10xbf16>, vector<10x128xbf16>, vector<10x128xf32> -> vector<10x128xf32>
    %36 = vector.broadcast %33 : vector<10x1xf32> to vector<10x128xf32>
    %37 = arith.addf %35, %36 : vector<10x128xf32>
    %38 = arith.truncf %29 : vector<10x128xf32> to vector<10x128xbf16>
    %cst_23 = arith.constant dense<0.000000e+00> : vector<10x128xf32>
    %39 = tpu.matmul %31, %38, %cst_23 {dimension_numbers = #tpu.dot_dimension_numbers<[1], [0], [0], [1], [0, 0, 1, 1], [], []>} : vector<10x10xbf16>, vector<10x128xbf16>, vector<10x128xf32> -> vector<10x128xf32>
    %40 = vector.broadcast %33 : vector<10x1xf32> to vector<10x128xf32>
    %41 = arith.addf %39, %40 : vector<10x128xf32>
    %cst_24 = arith.constant 0.000000e+00 : f32
    %42 = vector.broadcast %cst_24 : f32 to vector<10x128xf32>
    %43 = arith.maximumf %37, %42 : vector<10x128xf32>
    %cst_25 = arith.constant 1.000000e+00 : f32
    %44 = vector.broadcast %cst_25 : f32 to vector<10x128xf32>
    %45 = arith.mulf %44, %43 : vector<10x128xf32>
    %46 = arith.addf %45, %24 : vector<10x128xf32>
    %cst_26 = arith.constant 0.000000e+00 : f32
    %47 = vector.broadcast %cst_26 : f32 to vector<10x128xf32>
    %48 = arith.maximumf %41, %47 : vector<10x128xf32>
    %cst_27 = arith.constant 1.000000e+00 : f32
    %49 = vector.broadcast %cst_27 : f32 to vector<10x128xf32>
    %50 = arith.mulf %49, %48 : vector<10x128xf32>
    %51 = arith.addf %50, %29 : vector<10x128xf32>
    %c2 = arith.constant 2 : index
    %c0_28 = arith.constant 0 : index
    %c0_29 = arith.constant 0 : index
    %52 = vector.load %arg4[%c2, %c0_28, %c0_29] : memref<8x10x10xbf16, #tpu.memory_space<vmem>>, vector<1x10x10xbf16>
    %53 = vector.shape_cast %52 : vector<1x10x10xbf16> to vector<10x10xbf16>
    %c2_30 = arith.constant 2 : index
    %c0_31 = arith.constant 0 : index
    %c0_32 = arith.constant 0 : index
    %54 = vector.load %arg5[%c2_30, %c0_31, %c0_32] : memref<8x10x1xf32, #tpu.memory_space<vmem>>, vector<1x10x1xf32>
    %55 = vector.shape_cast %54 : vector<1x10x1xf32> to vector<10x1xf32>
    %56 = arith.truncf %46 : vector<10x128xf32> to vector<10x128xbf16>
    %cst_33 = arith.constant dense<0.000000e+00> : vector<10x128xf32>
    %57 = tpu.matmul %53, %56, %cst_33 {dimension_numbers = #tpu.dot_dimension_numbers<[1], [0], [0], [1], [0, 0, 1, 1], [], []>} : vector<10x10xbf16>, vector<10x128xbf16>, vector<10x128xf32> -> vector<10x128xf32>
    %58 = vector.broadcast %55 : vector<10x1xf32> to vector<10x128xf32>
    %59 = arith.addf %57, %58 : vector<10x128xf32>
    %60 = arith.truncf %51 : vector<10x128xf32> to vector<10x128xbf16>
    %cst_34 = arith.constant dense<0.000000e+00> : vector<10x128xf32>
    %61 = tpu.matmul %53, %60, %cst_34 {dimension_numbers = #tpu.dot_dimension_numbers<[1], [0], [0], [1], [0, 0, 1, 1], [], []>} : vector<10x10xbf16>, vector<10x128xbf16>, vector<10x128xf32> -> vector<10x128xf32>
    %62 = vector.broadcast %55 : vector<10x1xf32> to vector<10x128xf32>
    %63 = arith.addf %61, %62 : vector<10x128xf32>
    %cst_35 = arith.constant 0.000000e+00 : f32
    %64 = vector.broadcast %cst_35 : f32 to vector<10x128xf32>
    %65 = arith.maximumf %59, %64 : vector<10x128xf32>
    %cst_36 = arith.constant 1.000000e+00 : f32
    %66 = vector.broadcast %cst_36 : f32 to vector<10x128xf32>
    %67 = arith.mulf %66, %65 : vector<10x128xf32>
    %68 = arith.addf %67, %46 : vector<10x128xf32>
    %cst_37 = arith.constant 0.000000e+00 : f32
    %69 = vector.broadcast %cst_37 : f32 to vector<10x128xf32>
    %70 = arith.maximumf %63, %69 : vector<10x128xf32>
    %cst_38 = arith.constant 1.000000e+00 : f32
    %71 = vector.broadcast %cst_38 : f32 to vector<10x128xf32>
    %72 = arith.mulf %71, %70 : vector<10x128xf32>
    %73 = arith.addf %72, %51 : vector<10x128xf32>
    %c3 = arith.constant 3 : index
    %c0_39 = arith.constant 0 : index
    %c0_40 = arith.constant 0 : index
    %74 = vector.load %arg4[%c3, %c0_39, %c0_40] : memref<8x10x10xbf16, #tpu.memory_space<vmem>>, vector<1x10x10xbf16>
    %75 = vector.shape_cast %74 : vector<1x10x10xbf16> to vector<10x10xbf16>
    %c3_41 = arith.constant 3 : index
    %c0_42 = arith.constant 0 : index
    %c0_43 = arith.constant 0 : index
    %76 = vector.load %arg5[%c3_41, %c0_42, %c0_43] : memref<8x10x1xf32, #tpu.memory_space<vmem>>, vector<1x10x1xf32>
    %77 = vector.shape_cast %76 : vector<1x10x1xf32> to vector<10x1xf32>
    %78 = arith.truncf %68 : vector<10x128xf32> to vector<10x128xbf16>
    %cst_44 = arith.constant dense<0.000000e+00> : vector<10x128xf32>
    %79 = tpu.matmul %75, %78, %cst_44 {dimension_numbers = #tpu.dot_dimension_numbers<[1], [0], [0], [1], [0, 0, 1, 1], [], []>} : vector<10x10xbf16>, vector<10x128xbf16>, vector<10x128xf32> -> vector<10x128xf32>
    %80 = vector.broadcast %77 : vector<10x1xf32> to vector<10x128xf32>
    %81 = arith.addf %79, %80 : vector<10x128xf32>
    %82 = arith.truncf %73 : vector<10x128xf32> to vector<10x128xbf16>
    %cst_45 = arith.constant dense<0.000000e+00> : vector<10x128xf32>
    %83 = tpu.matmul %75, %82, %cst_45 {dimension_numbers = #tpu.dot_dimension_numbers<[1], [0], [0], [1], [0, 0, 1, 1], [], []>} : vector<10x10xbf16>, vector<10x128xbf16>, vector<10x128xf32> -> vector<10x128xf32>
    %84 = vector.broadcast %77 : vector<10x1xf32> to vector<10x128xf32>
    %85 = arith.addf %83, %84 : vector<10x128xf32>
    %cst_46 = arith.constant 0.000000e+00 : f32
    %86 = vector.broadcast %cst_46 : f32 to vector<10x128xf32>
    %87 = arith.maximumf %81, %86 : vector<10x128xf32>
    %cst_47 = arith.constant 1.000000e+00 : f32
    %88 = vector.broadcast %cst_47 : f32 to vector<10x128xf32>
    %89 = arith.mulf %88, %87 : vector<10x128xf32>
    %90 = arith.addf %89, %68 : vector<10x128xf32>
    %cst_48 = arith.constant 0.000000e+00 : f32
    %91 = vector.broadcast %cst_48 : f32 to vector<10x128xf32>
    %92 = arith.maximumf %85, %91 : vector<10x128xf32>
    %cst_49 = arith.constant 1.000000e+00 : f32
    %93 = vector.broadcast %cst_49 : f32 to vector<10x128xf32>
    %94 = arith.mulf %93, %92 : vector<10x128xf32>
    %95 = arith.addf %94, %73 : vector<10x128xf32>
    %c4 = arith.constant 4 : index
    %c0_50 = arith.constant 0 : index
    %c0_51 = arith.constant 0 : index
    %96 = vector.load %arg4[%c4, %c0_50, %c0_51] : memref<8x10x10xbf16, #tpu.memory_space<vmem>>, vector<1x10x10xbf16>
    %97 = vector.shape_cast %96 : vector<1x10x10xbf16> to vector<10x10xbf16>
    %c4_52 = arith.constant 4 : index
    %c0_53 = arith.constant 0 : index
    %c0_54 = arith.constant 0 : index
    %98 = vector.load %arg5[%c4_52, %c0_53, %c0_54] : memref<8x10x1xf32, #tpu.memory_space<vmem>>, vector<1x10x1xf32>
    %99 = vector.shape_cast %98 : vector<1x10x1xf32> to vector<10x1xf32>
    %100 = arith.truncf %90 : vector<10x128xf32> to vector<10x128xbf16>
    %cst_55 = arith.constant dense<0.000000e+00> : vector<10x128xf32>
    %101 = tpu.matmul %97, %100, %cst_55 {dimension_numbers = #tpu.dot_dimension_numbers<[1], [0], [0], [1], [0, 0, 1, 1], [], []>} : vector<10x10xbf16>, vector<10x128xbf16>, vector<10x128xf32> -> vector<10x128xf32>
    %102 = vector.broadcast %99 : vector<10x1xf32> to vector<10x128xf32>
    %103 = arith.addf %101, %102 : vector<10x128xf32>
    %104 = arith.truncf %95 : vector<10x128xf32> to vector<10x128xbf16>
    %cst_56 = arith.constant dense<0.000000e+00> : vector<10x128xf32>
    %105 = tpu.matmul %97, %104, %cst_56 {dimension_numbers = #tpu.dot_dimension_numbers<[1], [0], [0], [1], [0, 0, 1, 1], [], []>} : vector<10x10xbf16>, vector<10x128xbf16>, vector<10x128xf32> -> vector<10x128xf32>
    %106 = vector.broadcast %99 : vector<10x1xf32> to vector<10x128xf32>
    %107 = arith.addf %105, %106 : vector<10x128xf32>
    %cst_57 = arith.constant 0.000000e+00 : f32
    %108 = vector.broadcast %cst_57 : f32 to vector<10x128xf32>
    %109 = arith.maximumf %103, %108 : vector<10x128xf32>
    %cst_58 = arith.constant 1.000000e+00 : f32
    %110 = vector.broadcast %cst_58 : f32 to vector<10x128xf32>
    %111 = arith.mulf %110, %109 : vector<10x128xf32>
    %112 = arith.addf %111, %90 : vector<10x128xf32>
    %cst_59 = arith.constant 0.000000e+00 : f32
    %113 = vector.broadcast %cst_59 : f32 to vector<10x128xf32>
    %114 = arith.maximumf %107, %113 : vector<10x128xf32>
    %cst_60 = arith.constant 1.000000e+00 : f32
    %115 = vector.broadcast %cst_60 : f32 to vector<10x128xf32>
    %116 = arith.mulf %115, %114 : vector<10x128xf32>
    %117 = arith.addf %116, %95 : vector<10x128xf32>
    %c5 = arith.constant 5 : index
    %c0_61 = arith.constant 0 : index
    %c0_62 = arith.constant 0 : index
    %118 = vector.load %arg4[%c5, %c0_61, %c0_62] : memref<8x10x10xbf16, #tpu.memory_space<vmem>>, vector<1x10x10xbf16>
    %119 = vector.shape_cast %118 : vector<1x10x10xbf16> to vector<10x10xbf16>
    %c5_63 = arith.constant 5 : index
    %c0_64 = arith.constant 0 : index
    %c0_65 = arith.constant 0 : index
    %120 = vector.load %arg5[%c5_63, %c0_64, %c0_65] : memref<8x10x1xf32, #tpu.memory_space<vmem>>, vector<1x10x1xf32>
    %121 = vector.shape_cast %120 : vector<1x10x1xf32> to vector<10x1xf32>
    %122 = arith.truncf %112 : vector<10x128xf32> to vector<10x128xbf16>
    %cst_66 = arith.constant dense<0.000000e+00> : vector<10x128xf32>
    %123 = tpu.matmul %119, %122, %cst_66 {dimension_numbers = #tpu.dot_dimension_numbers<[1], [0], [0], [1], [0, 0, 1, 1], [], []>} : vector<10x10xbf16>, vector<10x128xbf16>, vector<10x128xf32> -> vector<10x128xf32>
    %124 = vector.broadcast %121 : vector<10x1xf32> to vector<10x128xf32>
    %125 = arith.addf %123, %124 : vector<10x128xf32>
    %126 = arith.truncf %117 : vector<10x128xf32> to vector<10x128xbf16>
    %cst_67 = arith.constant dense<0.000000e+00> : vector<10x128xf32>
    %127 = tpu.matmul %119, %126, %cst_67 {dimension_numbers = #tpu.dot_dimension_numbers<[1], [0], [0], [1], [0, 0, 1, 1], [], []>} : vector<10x10xbf16>, vector<10x128xbf16>, vector<10x128xf32> -> vector<10x128xf32>
    %128 = vector.broadcast %121 : vector<10x1xf32> to vector<10x128xf32>
    %129 = arith.addf %127, %128 : vector<10x128xf32>
    %cst_68 = arith.constant 0.000000e+00 : f32
    %130 = vector.broadcast %cst_68 : f32 to vector<10x128xf32>
    %131 = arith.maximumf %125, %130 : vector<10x128xf32>
    %cst_69 = arith.constant 1.000000e+00 : f32
    %132 = vector.broadcast %cst_69 : f32 to vector<10x128xf32>
    %133 = arith.mulf %132, %131 : vector<10x128xf32>
    %134 = arith.addf %133, %112 : vector<10x128xf32>
    %cst_70 = arith.constant 0.000000e+00 : f32
    %135 = vector.broadcast %cst_70 : f32 to vector<10x128xf32>
    %136 = arith.maximumf %129, %135 : vector<10x128xf32>
    %cst_71 = arith.constant 1.000000e+00 : f32
    %137 = vector.broadcast %cst_71 : f32 to vector<10x128xf32>
    %138 = arith.mulf %137, %136 : vector<10x128xf32>
    %139 = arith.addf %138, %117 : vector<10x128xf32>
    %c6 = arith.constant 6 : index
    %c0_72 = arith.constant 0 : index
    %c0_73 = arith.constant 0 : index
    %140 = vector.load %arg4[%c6, %c0_72, %c0_73] : memref<8x10x10xbf16, #tpu.memory_space<vmem>>, vector<1x10x10xbf16>
    %141 = vector.shape_cast %140 : vector<1x10x10xbf16> to vector<10x10xbf16>
    %c6_74 = arith.constant 6 : index
    %c0_75 = arith.constant 0 : index
    %c0_76 = arith.constant 0 : index
    %142 = vector.load %arg5[%c6_74, %c0_75, %c0_76] : memref<8x10x1xf32, #tpu.memory_space<vmem>>, vector<1x10x1xf32>
    %143 = vector.shape_cast %142 : vector<1x10x1xf32> to vector<10x1xf32>
    %144 = arith.truncf %134 : vector<10x128xf32> to vector<10x128xbf16>
    %cst_77 = arith.constant dense<0.000000e+00> : vector<10x128xf32>
    %145 = tpu.matmul %141, %144, %cst_77 {dimension_numbers = #tpu.dot_dimension_numbers<[1], [0], [0], [1], [0, 0, 1, 1], [], []>} : vector<10x10xbf16>, vector<10x128xbf16>, vector<10x128xf32> -> vector<10x128xf32>
    %146 = vector.broadcast %143 : vector<10x1xf32> to vector<10x128xf32>
    %147 = arith.addf %145, %146 : vector<10x128xf32>
    %148 = arith.truncf %139 : vector<10x128xf32> to vector<10x128xbf16>
    %cst_78 = arith.constant dense<0.000000e+00> : vector<10x128xf32>
    %149 = tpu.matmul %141, %148, %cst_78 {dimension_numbers = #tpu.dot_dimension_numbers<[1], [0], [0], [1], [0, 0, 1, 1], [], []>} : vector<10x10xbf16>, vector<10x128xbf16>, vector<10x128xf32> -> vector<10x128xf32>
    %150 = vector.broadcast %143 : vector<10x1xf32> to vector<10x128xf32>
    %151 = arith.addf %149, %150 : vector<10x128xf32>
    %cst_79 = arith.constant 0.000000e+00 : f32
    %152 = vector.broadcast %cst_79 : f32 to vector<10x128xf32>
    %153 = arith.maximumf %147, %152 : vector<10x128xf32>
    %cst_80 = arith.constant 1.000000e+00 : f32
    %154 = vector.broadcast %cst_80 : f32 to vector<10x128xf32>
    %155 = arith.mulf %154, %153 : vector<10x128xf32>
    %156 = arith.addf %155, %134 : vector<10x128xf32>
    %cst_81 = arith.constant 0.000000e+00 : f32
    %157 = vector.broadcast %cst_81 : f32 to vector<10x128xf32>
    %158 = arith.maximumf %151, %157 : vector<10x128xf32>
    %cst_82 = arith.constant 1.000000e+00 : f32
    %159 = vector.broadcast %cst_82 : f32 to vector<10x128xf32>
    %160 = arith.mulf %159, %158 : vector<10x128xf32>
    %161 = arith.addf %160, %139 : vector<10x128xf32>
    %c7 = arith.constant 7 : index
    %c0_83 = arith.constant 0 : index
    %c0_84 = arith.constant 0 : index
    %162 = vector.load %arg4[%c7, %c0_83, %c0_84] : memref<8x10x10xbf16, #tpu.memory_space<vmem>>, vector<1x10x10xbf16>
    %163 = vector.shape_cast %162 : vector<1x10x10xbf16> to vector<10x10xbf16>
    %c7_85 = arith.constant 7 : index
    %c0_86 = arith.constant 0 : index
    %c0_87 = arith.constant 0 : index
    %164 = vector.load %arg5[%c7_85, %c0_86, %c0_87] : memref<8x10x1xf32, #tpu.memory_space<vmem>>, vector<1x10x1xf32>
    %165 = vector.shape_cast %164 : vector<1x10x1xf32> to vector<10x1xf32>
    %166 = arith.truncf %156 : vector<10x128xf32> to vector<10x128xbf16>
    %cst_88 = arith.constant dense<0.000000e+00> : vector<10x128xf32>
    %167 = tpu.matmul %163, %166, %cst_88 {dimension_numbers = #tpu.dot_dimension_numbers<[1], [0], [0], [1], [0, 0, 1, 1], [], []>} : vector<10x10xbf16>, vector<10x128xbf16>, vector<10x128xf32> -> vector<10x128xf32>
    %168 = vector.broadcast %165 : vector<10x1xf32> to vector<10x128xf32>
    %169 = arith.addf %167, %168 : vector<10x128xf32>
    %170 = arith.truncf %161 : vector<10x128xf32> to vector<10x128xbf16>
    %cst_89 = arith.constant dense<0.000000e+00> : vector<10x128xf32>
    %171 = tpu.matmul %163, %170, %cst_89 {dimension_numbers = #tpu.dot_dimension_numbers<[1], [0], [0], [1], [0, 0, 1, 1], [], []>} : vector<10x10xbf16>, vector<10x128xbf16>, vector<10x128xf32> -> vector<10x128xf32>
    %172 = vector.broadcast %165 : vector<10x1xf32> to vector<10x128xf32>
    %173 = arith.addf %171, %172 : vector<10x128xf32>
    %cst_90 = arith.constant 0.000000e+00 : f32
    %174 = vector.broadcast %cst_90 : f32 to vector<10x128xf32>
    %175 = arith.maximumf %169, %174 : vector<10x128xf32>
    %cst_91 = arith.constant 1.000000e+00 : f32
    %176 = vector.broadcast %cst_91 : f32 to vector<10x128xf32>
    %177 = arith.mulf %176, %175 : vector<10x128xf32>
    %178 = arith.addf %177, %156 : vector<10x128xf32>
    %cst_92 = arith.constant 0.000000e+00 : f32
    %179 = vector.broadcast %cst_92 : f32 to vector<10x128xf32>
    %180 = arith.maximumf %173, %179 : vector<10x128xf32>
    %cst_93 = arith.constant 1.000000e+00 : f32
    %181 = vector.broadcast %cst_93 : f32 to vector<10x128xf32>
    %182 = arith.mulf %181, %180 : vector<10x128xf32>
    %183 = arith.addf %182, %161 : vector<10x128xf32>
    %c0_94 = arith.constant 0 : index
    %c0_95 = arith.constant 0 : index
    %184 = vector.load %arg6[%c0_94, %c0_95] : memref<10x10xbf16, #tpu.memory_space<vmem>>, vector<10x10xbf16>
    %c0_96 = arith.constant 0 : index
    %c0_97 = arith.constant 0 : index
    %185 = vector.load %arg7[%c0_96, %c0_97] : memref<10x1xf32, #tpu.memory_space<vmem>>, vector<10x1xf32>
    %186 = arith.truncf %178 : vector<10x128xf32> to vector<10x128xbf16>
    %cst_98 = arith.constant dense<0.000000e+00> : vector<10x128xf32>
    %187 = tpu.matmul %184, %186, %cst_98 {dimension_numbers = #tpu.dot_dimension_numbers<[1], [0], [0], [1], [0, 0, 1, 1], [], []>} : vector<10x10xbf16>, vector<10x128xbf16>, vector<10x128xf32> -> vector<10x128xf32>
    %188 = vector.broadcast %185 : vector<10x1xf32> to vector<10x128xf32>
    %189 = arith.addf %187, %188 : vector<10x128xf32>
    %190 = arith.truncf %183 : vector<10x128xf32> to vector<10x128xbf16>
    %cst_99 = arith.constant dense<0.000000e+00> : vector<10x128xf32>
    %191 = tpu.matmul %184, %190, %cst_99 {dimension_numbers = #tpu.dot_dimension_numbers<[1], [0], [0], [1], [0, 0, 1, 1], [], []>} : vector<10x10xbf16>, vector<10x128xbf16>, vector<10x128xf32> -> vector<10x128xf32>
    %192 = vector.broadcast %185 : vector<10x1xf32> to vector<10x128xf32>
    %193 = arith.addf %191, %192 : vector<10x128xf32>
    %cst_100 = arith.constant 0.000000e+00 : f32
    %194 = vector.broadcast %cst_100 : f32 to vector<10x128xf32>
    %195 = arith.maximumf %189, %194 : vector<10x128xf32>
    %c0_101 = arith.constant 0 : index
    %c0_102 = arith.constant 0 : index
    %196 = vector.load %arg8[%c0_101, %c0_102] : memref<10x256xf32, #tpu.memory_space<vmem>>, vector<10x128xf32>
    tpu.vector_store %arg8[%c0_101, %c0_102], %195 {strides = array<i32>} : memref<10x256xf32, #tpu.memory_space<vmem>>, vector<10x128xf32>,
    %cst_103 = arith.constant 0.000000e+00 : f32
    %197 = vector.broadcast %cst_103 : f32 to vector<10x128xf32>
    %198 = arith.maximumf %193, %197 : vector<10x128xf32>
    %c0_104 = arith.constant 0 : index
    %c128 = arith.constant 128 : index
    %199 = vector.load %arg8[%c0_104, %c128] : memref<10x256xf32, #tpu.memory_space<vmem>>, vector<10x128xf32>
    tpu.vector_store %arg8[%c0_104, %c128], %198 {strides = array<i32>} : memref<10x256xf32, #tpu.memory_space<vmem>>, vector<10x128xf32>,
    return
  }
  func.func @transform_0(%arg0: i32) -> (i32, i32) {
    %c0_i32 = arith.constant 0 : i32
    %c0_i32_0 = arith.constant 0 : i32
    return %c0_i32, %arg0 : i32, i32
  }
  func.func @transform_1(%arg0: i32) -> (i32, i32) {
    %c0_i32 = arith.constant 0 : i32
    %c0_i32_0 = arith.constant 0 : i32
    %c0_i32_1 = arith.constant 0 : i32
    return %c0_i32, %c0_i32_0 : i32, i32
  }
  func.func @transform_2(%arg0: i32) -> (i32, i32) {
    %c0_i32 = arith.constant 0 : i32
    %c0_i32_0 = arith.constant 0 : i32
    %c0_i32_1 = arith.constant 0 : i32
    return %c0_i32, %c0_i32_0 : i32, i32
  }
  func.func @transform_3(%arg0: i32) -> (i32, i32, i32) {
    %c0_i32 = arith.constant 0 : i32
    %c0_i32_0 = arith.constant 0 : i32
    %c0_i32_1 = arith.constant 0 : i32
    %c0_i32_2 = arith.constant 0 : i32
    return %c0_i32, %c0_i32_0, %c0_i32_1 : i32, i32, i32
  }
  func.func @transform_4(%arg0: i32) -> (i32, i32, i32) {
    %c0_i32 = arith.constant 0 : i32
    %c0_i32_0 = arith.constant 0 : i32
    %c0_i32_1 = arith.constant 0 : i32
    %c0_i32_2 = arith.constant 0 : i32
    return %c0_i32, %c0_i32_0, %c0_i32_1 : i32, i32, i32
  }
  func.func @transform_5(%arg0: i32) -> (i32, i32) {
    %c0_i32 = arith.constant 0 : i32
    %c0_i32_0 = arith.constant 0 : i32
    %c0_i32_1 = arith.constant 0 : i32
    return %c0_i32, %c0_i32_0 : i32, i32
  }
  func.func @transform_6(%arg0: i32) -> (i32, i32) {
    %c0_i32 = arith.constant 0 : i32
    %c0_i32_0 = arith.constant 0 : i32
    %c0_i32_1 = arith.constant 0 : i32
    return %c0_i32, %c0_i32_0 : i32, i32
  }
  func.func @transform_7(%arg0: i32) -> (i32, i32) {
    %c0_i32 = arith.constant 0 : i32
    %c0_i32_0 = arith.constant 0 : i32
    return %c0_i32, %arg0 : i32, i32
  }
}

</mosaic_0001>

<llo_original>
// kernel: tpu_custom_call.1
$region0: #{tpu_custom_call.1}
  #allocation0 [shape = 'u32[]', space=smem, size = 0x4, offset = 0x4, fixed_abs, tag = 'smem constant byte address 0x4 - core index']
  #allocation1 [shape = 'u32[144,128]{1,0:T(1,128)}', space=vmem, size = 0x12000, scoped, tag = 'internal scratch']
  %s0 = inlined_call_operand.hbm [shape: bf16[784,256], index: 0, kind: input, shape index: {}]
  %s1 = inlined_call_operand.vmem [shape: bf16[10,784], index: 1, kind: input, shape index: {}]
  %s2 = inlined_call_operand.vmem [shape: f32[10,1], index: 2, kind: input, shape index: {}]
  %s3 = inlined_call_operand.vmem [shape: bf16[8,10,10], index: 3, kind: input, shape index: {}]
  %s4 = inlined_call_operand.vmem [shape: f32[8,10,1], index: 4, kind: input, shape index: {}]
  %s5 = inlined_call_operand.vmem [shape: bf16[10,10], index: 5, kind: input, shape index: {}]
  %s6 = inlined_call_operand.vmem [shape: f32[10,1], index: 6, kind: input, shape index: {}]
  %s7 = inlined_call_operand.hbm [shape: f32[10,256], index: 7, kind: output, shape index: {}]
  %s8 = sld [smem:[#allocation0]]
  $region42: #{tpu_custom_call.1} parent=0
    _
  %s10 = ssub.s32 1, %s8
  %s11 = scalar_select 0, %s10, %s8
  $region1: #{tpu_custom_call.1} parent=0
    #allocation2 [shape = 'u8[401408]{0}', space=vmem, size = 0x62000, scoped, tag = 'input window, operand 0, single buffered']
    #allocation3 [shape = 's32[1]{0}', space=sflag, size = 0x4, scoped, tag = 'scoped memory for tpu_custom_call.1']
    #allocation4 [shape = 's32[1]{0}', space=sflag, size = 0x4, scoped, tag = 'scoped memory for tpu_custom_call.1']
    #allocation5 [shape = 'u8[16384]{0}', space=vmem, size = 0x4000, scoped, tag = 'output window, operand 0, single buffered']
    %12 = vsyncpa [#allocation3], 0
    %13 = vsyncpa [#allocation4], 0
    // Predicated region
    $region2: #{tpu_custom_call.1} parent=1 // pred_check
      _
    $region3: #{tpu_custom_call.1} parent=1 // pred_check_branch
      %15 = sbr.rel (0) target = $region5
    $region4: #{tpu_custom_call.1} parent=1 // pred_region
      %s17 = ssub.s32 12544, 12544
      %18 = vsyncadd [#allocation3], %s17
      %s19 = sshll.u32 [#allocation2], 4
      %s20 = int_to_ptr.vmem [resolvable:$true] %s19
      %25 = dma.hbm_to_vmem [thread:$0]  %s0, 12544, %s20, [#allocation3], 128, 128, 8
    $region5: #{tpu_custom_call.1} parent=1 // pred_fallthru
      _
    // Predicated region
    $region6: #{tpu_custom_call.1} parent=1 // pred_check
      _
    $region7: #{tpu_custom_call.1} parent=1 // pred_check_branch
      %27 = sbr.rel (0) target = $region9
    $region8: #{tpu_custom_call.1} parent=1 // pred_region
      _
    $region9: #{tpu_custom_call.1} parent=1 // pred_fallthru
      _
    // Predicated region
    $region10: #{tpu_custom_call.1} parent=1 // pred_check
      _
    $region11: #{tpu_custom_call.1} parent=1 // pred_check_branch
      %29 = sbr.rel (0) target = $region13
    $region12: #{tpu_custom_call.1} parent=1 // pred_region
      _
    $region13: #{tpu_custom_call.1} parent=1 // pred_fallthru
      _
    // Predicated region
    $region14: #{tpu_custom_call.1} parent=1 // pred_check
      _
    $region15: #{tpu_custom_call.1} parent=1 // pred_check_branch
      %31 = sbr.rel (0) target = $region17
    $region16: #{tpu_custom_call.1} parent=1 // pred_region
      _
    $region17: #{tpu_custom_call.1} parent=1 // pred_fallthru
      _
    // Predicated region
    $region18: #{tpu_custom_call.1} parent=1 // pred_check
      _
    $region19: #{tpu_custom_call.1} parent=1 // pred_check_branch
      %33 = sbr.rel (0) target = $region21
    $region20: #{tpu_custom_call.1} parent=1 // pred_region
      _
    $region21: #{tpu_custom_call.1} parent=1 // pred_fallthru
      _
    // Predicated region
    $region22: #{tpu_custom_call.1} parent=1 // pred_check
      _
    $region23: #{tpu_custom_call.1} parent=1 // pred_check_branch
      %35 = sbr.rel (0) target = $region25
    $region24: #{tpu_custom_call.1} parent=1 // pred_region
      _
    $region25: #{tpu_custom_call.1} parent=1 // pred_fallthru
      _
    // Predicated region
    $region26: #{tpu_custom_call.1} parent=1 // pred_check
      _
    $region27: #{tpu_custom_call.1} parent=1 // pred_check_branch
      %37 = sbr.rel (0) target = $region29
    $region28: #{tpu_custom_call.1} parent=1 // pred_region
      _
    $region29: #{tpu_custom_call.1} parent=1 // pred_fallthru
      _
    // Predicated region
    $region30: #{tpu_custom_call.1} parent=1 // pred_check
      _
    $region31: #{tpu_custom_call.1} parent=1 // pred_check_branch
      %39 = sbr.rel (0) target = $region33
    $region32: #{tpu_custom_call.1} parent=1 // pred_region
      %40 = dma.done [#allocation3], 12544
    $region33: #{tpu_custom_call.1} parent=1 // pred_fallthru
      _
    %v42 = vld [vmem:[%s1] sm:$0xff]
    %v43 = vld [vmem:[%s1 + $0x8] sm:$0xff]
    %v44 = vld [vmem:[%s1 + $0x10] sm:$0xff]
    %v45 = vld [vmem:[%s1 + $0x18] sm:$0xf]
    %v46 = vld [vmem:[%s1 + $0x1c] sm:$0x11]
    %v47 = vld [vmem:[%s1 + $0x24] sm:$0x11]
    %v48 = vld [vmem:[%s1 + $0x2c] sm:$0x11]
    %v49 = vld [vmem:[%s1 + $0x34] sm:$0x1]
    %v50 = vld [vmem:[#allocation2] sm:$0xff]
    %v51 = vld [vmem:[#allocation2 + $0x8] sm:$0xff]
    %v52 = vld [vmem:[#allocation2 + $0x10] sm:$0xff]
    %v53 = vld [vmem:[#allocation2 + $0x18] sm:$0xff]
    %v54 = vld [vmem:[#allocation2 + $0x20] sm:$0xff]
    %v55 = vld [vmem:[#allocation2 + $0x28] sm:$0xff]
    %v56 = vld [vmem:[#allocation2 + $0x30] sm:$0xff]
    %v57 = vld [vmem:[#allocation2 + $0x38] sm:$0xff]
    %v58 = vld [vmem:[#allocation2 + $0x40] sm:$0xff]
    %v59 = vld [vmem:[#allocation2 + $0x48] sm:$0xff]
    %v60 = vld [vmem:[#allocation2 + $0x50] sm:$0xff]
    %v61 = vld [vmem:[#allocation2 + $0x58] sm:$0xff]
    %v62 = vld [vmem:[#allocation2 + $0x60] sm:$0xff]
    %v63 = vld [vmem:[#allocation2 + $0x68] sm:$0xff]
    %v64 = vld [vmem:[#allocation2 + $0x70] sm:$0xff]
    %v65 = vld [vmem:[#allocation2 + $0x78] sm:$0xff]
    %v66 = vld [vmem:[#allocation2 + $0x80] sm:$0xff]
    %v67 = vld [vmem:[#allocation2 + $0x88] sm:$0xff]
    %v68 = vld [vmem:[#allocation2 + $0x90] sm:$0xff]
    %v69 = vld [vmem:[#allocation2 + $0x98] sm:$0xff]
    %v70 = vld [vmem:[#allocation2 + $0xa0] sm:$0xff]
    %v71 = vld [vmem:[#allocation2 + $0xa8] sm:$0xff]
    %v72 = vld [vmem:[#allocation2 + $0xb0] sm:$0xff]
    %v73 = vld [vmem:[#allocation2 + $0xb8] sm:$0xff]
    %v74 = vld [vmem:[#allocation2 + $0xc0] sm:$0xff]
    %v75 = vld [vmem:[#allocation2 + $0xc8] sm:$0xff]
    %v76 = vld [vmem:[#allocation2 + $0xd0] sm:$0xff]
    %v77 = vld [vmem:[#allocation2 + $0xd8] sm:$0xff]
    %v78 = vld [vmem:[#allocation2 + $0xe0] sm:$0xff]
    %v79 = vld [vmem:[#allocation2 + $0xe8] sm:$0xff]
    %v80 = vld [vmem:[#allocation2 + $0xf0] sm:$0xff]
    %v81 = vld [vmem:[#allocation2 + $0xf8] sm:$0xff]
    %v82 = vld [vmem:[#allocation2 + $0x100] sm:$0xff]
    %v83 = vld [vmem:[#allocation2 + $0x108] sm:$0xff]
    %v84 = vld [vmem:[#allocation2 + $0x110] sm:$0xff]
    %v85 = vld [vmem:[#allocation2 + $0x118] sm:$0xff]
    %v86 = vld [vmem:[#allocation2 + $0x120] sm:$0xff]
    %v87 = vld [vmem:[#allocation2 + $0x128] sm:$0xff]
    %v88 = vld [vmem:[#allocation2 + $0x130] sm:$0xff]
    %v89 = vld [vmem:[#allocation2 + $0x138] sm:$0xff]
    %v90 = vld [vmem:[#allocation2 + $0x140] sm:$0xff]
    %v91 = vld [vmem:[#allocation2 + $0x148] sm:$0xff]
    %v92 = vld [vmem:[#allocation2 + $0x150] sm:$0xff]
    %v93 = vld [vmem:[#allocation2 + $0x158] sm:$0xff]
    %v94 = vld [vmem:[#allocation2 + $0x160] sm:$0xff]
    %v95 = vld [vmem:[#allocation2 + $0x168] sm:$0xff]
    %v96 = vld [vmem:[#allocation2 + $0x170] sm:$0xff]
    %v97 = vld [vmem:[#allocation2 + $0x178] sm:$0xff]
    %v98 = vld [vmem:[#allocation2 + $0x180] sm:$0xff]
    %v99 = vld [vmem:[#allocation2 + $0x188] sm:$0xff]
    %v100 = vld [vmem:[#allocation2 + $0x190] sm:$0xff]
    %v101 = vld [vmem:[#allocation2 + $0x198] sm:$0xff]
    %v102 = vld [vmem:[#allocation2 + $0x1a0] sm:$0xff]
    %v103 = vld [vmem:[#allocation2 + $0x1a8] sm:$0xff]
    %v104 = vld [vmem:[#allocation2 + $0x1b0] sm:$0xff]
    %v105 = vld [vmem:[#allocation2 + $0x1b8] sm:$0xff]
    %v106 = vld [vmem:[#allocation2 + $0x1c0] sm:$0xff]
    %v107 = vld [vmem:[#allocation2 + $0x1c8] sm:$0xff]
    %v108 = vld [vmem:[#allocation2 + $0x1d0] sm:$0xff]
    %v109 = vld [vmem:[#allocation2 + $0x1d8] sm:$0xff]
    %v110 = vld [vmem:[#allocation2 + $0x1e0] sm:$0xff]
    %v111 = vld [vmem:[#allocation2 + $0x1e8] sm:$0xff]
    %v112 = vld [vmem:[#allocation2 + $0x1f0] sm:$0xff]
    %v113 = vld [vmem:[#allocation2 + $0x1f8] sm:$0xff]
    %v114 = vld [vmem:[#allocation2 + $0x200] sm:$0xff]
    %v115 = vld [vmem:[#allocation2 + $0x208] sm:$0xff]
    %v116 = vld [vmem:[#allocation2 + $0x210] sm:$0xff]
    %v117 = vld [vmem:[#allocation2 + $0x218] sm:$0xff]
    %v118 = vld [vmem:[#allocation2 + $0x220] sm:$0xff]
    %v119 = vld [vmem:[#allocation2 + $0x228] sm:$0xff]
    %v120 = vld [vmem:[#allocation2 + $0x230] sm:$0xff]
    %v121 = vld [vmem:[#allocation2 + $0x238] sm:$0xff]
    %v122 = vld [vmem:[#allocation2 + $0x240] sm:$0xff]
    %v123 = vld [vmem:[#allocation2 + $0x248] sm:$0xff]
    %v124 = vld [vmem:[#allocation2 + $0x250] sm:$0xff]
    %v125 = vld [vmem:[#allocation2 + $0x258] sm:$0xff]
    %v126 = vld [vmem:[#allocation2 + $0x260] sm:$0xff]
    %v127 = vld [vmem:[#allocation2 + $0x268] sm:$0xff]
    %v128 = vld [vmem:[#allocation2 + $0x270] sm:$0xff]
    %v129 = vld [vmem:[#allocation2 + $0x278] sm:$0xff]
    %v130 = vld [vmem:[#allocation2 + $0x280] sm:$0xff]
    %v131 = vld [vmem:[#allocation2 + $0x288] sm:$0xff]
    %v132 = vld [vmem:[#allocation2 + $0x290] sm:$0xff]
    %v133 = vld [vmem:[#allocation2 + $0x298] sm:$0xff]
    %v134 = vld [vmem:[#allocation2 + $0x2a0] sm:$0xff]
    %v135 = vld [vmem:[#allocation2 + $0x2a8] sm:$0xff]
    %v136 = vld [vmem:[#allocation2 + $0x2b0] sm:$0xff]
    %v137 = vld [vmem:[#allocation2 + $0x2b8] sm:$0xff]
    %v138 = vld [vmem:[#allocation2 + $0x2c0] sm:$0xff]
    %v139 = vld [vmem:[#allocation2 + $0x2c8] sm:$0xff]
    %v140 = vld [vmem:[#allocation2 + $0x2d0] sm:$0xff]
    %v141 = vld [vmem:[#allocation2 + $0x2d8] sm:$0xff]
    %v142 = vld [vmem:[#allocation2 + $0x2e0] sm:$0xff]
    %v143 = vld [vmem:[#allocation2 + $0x2e8] sm:$0xff]
    %v144 = vld [vmem:[#allocation2 + $0x2f0] sm:$0xff]
    %v145 = vld [vmem:[#allocation2 + $0x2f8] sm:$0xff]
    %v146 = vld [vmem:[#allocation2 + $0x300] sm:$0xff]
    %v147 = vld [vmem:[#allocation2 + $0x308] sm:$0xff]
    %v148 = vld [vmem:[%s2] sm:$0xff]
    %v149 = vld [vmem:[%s2 + $0x8] sm:$0x3]
    %151 = vset.pattern.permute.xlu0 0
    %152 = vperm.xlu0 %151, %v148
    %v153 = vpop.permute.xlu0 %152
    %156 = vset.pattern.permute.xlu0 0
    %157 = vperm.xlu0 %156, %v149
    %v158 = vpop.permute.xlu0 %157
    %v168 = vunpack.c.l.b16 %v42
    %v169 = vunpack.c.h.b16 %v42
    %v170 = vunpack.c.l.b16 %v43
    %v171 = vunpack.c.h.b16 %v43
    %v172 = vunpack.c.l.b16 %v44
    %v173 = vunpack.c.h.b16 %v44
    %v174 = vunpack.c.l.b16 %v45
    %v175 = vunpack.c.l.b16 %v46
    %v176 = vunpack.c.h.b16 %v46
    %v177 = vunpack.c.l.b16 %v47
    %v178 = vunpack.c.h.b16 %v47
    %v179 = vunpack.c.l.b16 %v48
    %v180 = vunpack.c.h.b16 %v48
    %v181 = vunpack.c.l.b16 %v49
    %v182 = vpack.c.b16 %v175, %v168
    %v183 = vpack.c.b16 %v176, %v169
    %v184 = vpack.c.b16 %v177, %v170
    %v185 = vpack.c.b16 %v178, %v171
    %v186 = vpack.c.b16 %v179, %v172
    %v187 = vpack.c.b16 %v180, %v173
    %v188 = vpack.c.b16 %v181, %v174
    %v293 = vunpack.c.l.b16 %v50
    %v294 = vunpack.c.h.b16 %v50
    %v295 = vunpack.c.l.b16 %v51
    %v296 = vunpack.c.h.b16 %v51
    %v297 = vunpack.c.l.b16 %v52
    %v298 = vunpack.c.h.b16 %v52
    %v299 = vunpack.c.l.b16 %v53
    %v300 = vunpack.c.h.b16 %v53
    %v301 = vunpack.c.l.b16 %v54
    %v302 = vunpack.c.h.b16 %v54
    %v303 = vunpack.c.l.b16 %v55
    %v304 = vunpack.c.h.b16 %v55
    %v305 = vunpack.c.l.b16 %v56
    %v306 = vunpack.c.h.b16 %v56
    %v307 = vunpack.c.l.b16 %v57
    %v308 = vunpack.c.h.b16 %v57
    %v309 = vunpack.c.l.b16 %v58
    %v310 = vunpack.c.h.b16 %v58
    %v311 = vunpack.c.l.b16 %v59
    %v312 = vunpack.c.h.b16 %v59
    %v313 = vunpack.c.l.b16 %v60
    %v314 = vunpack.c.h.b16 %v60
    %v315 = vunpack.c.l.b16 %v61
    %v316 = vunpack.c.h.b16 %v61
    %v317 = vunpack.c.l.b16 %v62
    %v318 = vunpack.c.h.b16 %v62
    %v319 = vunpack.c.l.b16 %v63
    %v320 = vunpack.c.h.b16 %v63
    %v321 = vunpack.c.l.b16 %v64
    %v322 = vunpack.c.h.b16 %v64
    %v323 = vunpack.c.l.b16 %v65
    %v324 = vunpack.c.h.b16 %v65
    %v325 = vunpack.c.l.b16 %v66
    %v326 = vunpack.c.h.b16 %v66
    %v327 = vunpack.c.l.b16 %v67
    %v328 = vunpack.c.h.b16 %v67
    %v329 = vunpack.c.l.b16 %v68
    %v330 = vunpack.c.h.b16 %v68
    %v331 = vunpack.c.l.b16 %v69
    %v332 = vunpack.c.h.b16 %v69
    %v333 = vunpack.c.l.b16 %v70
    %v334 = vunpack.c.h.b16 %v70
    %v335 = vunpack.c.l.b16 %v71
    %v336 = vunpack.c.h.b16 %v71
    %v337 = vunpack.c.l.b16 %v72
    %v338 = vunpack.c.h.b16 %v72
    %v339 = vunpack.c.l.b16 %v73
    %v340 = vunpack.c.h.b16 %v73
    %v341 = vunpack.c.l.b16 %v74
    %v342 = vunpack.c.h.b16 %v74
    %v343 = vunpack.c.l.b16 %v75
    %v344 = vunpack.c.h.b16 %v75
    %v345 = vunpack.c.l.b16 %v76
    %v346 = vunpack.c.h.b16 %v76
    %v347 = vunpack.c.l.b16 %v77
    %v348 = vunpack.c.h.b16 %v77
    %v349 = vunpack.c.l.b16 %v78
    %v350 = vunpack.c.h.b16 %v78
    %v351 = vunpack.c.l.b16 %v79
    %v352 = vunpack.c.h.b16 %v79
    %v353 = vunpack.c.l.b16 %v80
    %v354 = vunpack.c.h.b16 %v80
    %v355 = vunpack.c.l.b16 %v81
    %v356 = vunpack.c.h.b16 %v81
    %v357 = vunpack.c.l.b16 %v82
    %v358 = vunpack.c.h.b16 %v82
    %v359 = vunpack.c.l.b16 %v83
    %v360 = vunpack.c.h.b16 %v83
    %v361 = vunpack.c.l.b16 %v84
    %v362 = vunpack.c.h.b16 %v84
    %v363 = vunpack.c.l.b16 %v85
    %v364 = vunpack.c.h.b16 %v85
    %v365 = vunpack.c.l.b16 %v86
    %v366 = vunpack.c.h.b16 %v86
    %v367 = vunpack.c.l.b16 %v87
    %v368 = vunpack.c.h.b16 %v87
    %v369 = vunpack.c.l.b16 %v88
    %v370 = vunpack.c.h.b16 %v88
    %v371 = vunpack.c.l.b16 %v89
    %v372 = vunpack.c.h.b16 %v89
    %v373 = vunpack.c.l.b16 %v90
    %v374 = vunpack.c.h.b16 %v90
    %v375 = vunpack.c.l.b16 %v91
    %v376 = vunpack.c.h.b16 %v91
    %v377 = vunpack.c.l.b16 %v92
    %v378 = vunpack.c.h.b16 %v92
    %v379 = vunpack.c.l.b16 %v93
    %v380 = vunpack.c.h.b16 %v93
    %v381 = vunpack.c.l.b16 %v94
    %v382 = vunpack.c.h.b16 %v94
    %v383 = vunpack.c.l.b16 %v95
    %v384 = vunpack.c.h.b16 %v95
    %v385 = vunpack.c.l.b16 %v96
    %v386 = vunpack.c.h.b16 %v96
    %v387 = vunpack.c.l.b16 %v97
    %v388 = vunpack.c.h.b16 %v97
    %v389 = vunpack.c.l.b16 %v98
    %v390 = vunpack.c.h.b16 %v98
    %v391 = vunpack.c.l.b16 %v99
    %v392 = vunpack.c.h.b16 %v99
    %v393 = vunpack.c.l.b16 %v100
    %v394 = vunpack.c.h.b16 %v100
    %v395 = vunpack.c.l.b16 %v101
    %v396 = vunpack.c.h.b16 %v101
    %v397 = vunpack.c.l.b16 %v102
    %v398 = vunpack.c.h.b16 %v102
    %v399 = vunpack.c.l.b16 %v103
    %v400 = vunpack.c.h.b16 %v103
    %v401 = vunpack.c.l.b16 %v104
    %v402 = vunpack.c.h.b16 %v104
    %v403 = vunpack.c.l.b16 %v105
    %v404 = vunpack.c.h.b16 %v105
    %v405 = vunpack.c.l.b16 %v106
    %v406 = vunpack.c.h.b16 %v106
    %v407 = vunpack.c.l.b16 %v107
    %v408 = vunpack.c.h.b16 %v107
    %v409 = vunpack.c.l.b16 %v108
    %v410 = vunpack.c.h.b16 %v108
    %v411 = vunpack.c.l.b16 %v109
    %v412 = vunpack.c.h.b16 %v109
    %v413 = vunpack.c.l.b16 %v110
    %v414 = vunpack.c.h.b16 %v110
    %v415 = vunpack.c.l.b16 %v111
    %v416 = vunpack.c.h.b16 %v111
    %v417 = vunpack.c.l.b16 %v112
    %v418 = vunpack.c.h.b16 %v112
    %v419 = vunpack.c.l.b16 %v113
    %v420 = vunpack.c.h.b16 %v113
    %v421 = vunpack.c.l.b16 %v114
    %v422 = vunpack.c.h.b16 %v114
    %v423 = vunpack.c.l.b16 %v115
    %v424 = vunpack.c.h.b16 %v115
    %v425 = vunpack.c.l.b16 %v116
    %v426 = vunpack.c.h.b16 %v116
    %v427 = vunpack.c.l.b16 %v117
    %v428 = vunpack.c.h.b16 %v117
    %v429 = vunpack.c.l.b16 %v118
    %v430 = vunpack.c.h.b16 %v118
    %v431 = vunpack.c.l.b16 %v119
    %v432 = vunpack.c.h.b16 %v119
    %v433 = vunpack.c.l.b16 %v120
    %v434 = vunpack.c.h.b16 %v120
    %v435 = vunpack.c.l.b16 %v121
    %v436 = vunpack.c.h.b16 %v121
    %v437 = vunpack.c.l.b16 %v122
    %v438 = vunpack.c.h.b16 %v122
    %v439 = vunpack.c.l.b16 %v123
    %v440 = vunpack.c.h.b16 %v123
    %v441 = vunpack.c.l.b16 %v124
    %v442 = vunpack.c.h.b16 %v124
    %v443 = vunpack.c.l.b16 %v125
    %v444 = vunpack.c.h.b16 %v125
    %v445 = vunpack.c.l.b16 %v126
    %v446 = vunpack.c.h.b16 %v126
    %v447 = vunpack.c.l.b16 %v127
    %v448 = vunpack.c.h.b16 %v127
    %v449 = vunpack.c.l.b16 %v128
    %v450 = vunpack.c.h.b16 %v128
    %v451 = vunpack.c.l.b16 %v129
    %v452 = vunpack.c.h.b16 %v129
    %v453 = vunpack.c.l.b16 %v130
    %v454 = vunpack.c.h.b16 %v130
    %v455 = vunpack.c.l.b16 %v131
    %v456 = vunpack.c.h.b16 %v131
    %v457 = vunpack.c.l.b16 %v132
    %v458 = vunpack.c.h.b16 %v132
    %v459 = vunpack.c.l.b16 %v133
    %v460 = vunpack.c.h.b16 %v133
    %v461 = vunpack.c.l.b16 %v134
    %v462 = vunpack.c.h.b16 %v134
    %v463 = vunpack.c.l.b16 %v135
    %v464 = vunpack.c.h.b16 %v135
    %v465 = vunpack.c.l.b16 %v136
    %v466 = vunpack.c.h.b16 %v136
    %v467 = vunpack.c.l.b16 %v137
    %v468 = vunpack.c.h.b16 %v137
    %v469 = vunpack.c.l.b16 %v138
    %v470 = vunpack.c.h.b16 %v138
    %v471 = vunpack.c.l.b16 %v139
    %v472 = vunpack.c.h.b16 %v139
    %v473 = vunpack.c.l.b16 %v140
    %v474 = vunpack.c.h.b16 %v140
    %v475 = vunpack.c.l.b16 %v141
    %v476 = vunpack.c.h.b16 %v141
    %v477 = vunpack.c.l.b16 %v142
    %v478 = vunpack.c.h.b16 %v142
    %v479 = vunpack.c.l.b16 %v143
    %v480 = vunpack.c.h.b16 %v143
    %v481 = vunpack.c.l.b16 %v144
    %v482 = vunpack.c.h.b16 %v144
    %v483 = vunpack.c.l.b16 %v145
    %v484 = vunpack.c.h.b16 %v145
    %v485 = vunpack.c.l.b16 %v146
    %v486 = vunpack.c.h.b16 %v146
    %v487 = vunpack.c.l.b16 %v147
    %v488 = vunpack.c.h.b16 %v147
    %v489 = vpack.c.b16 %v295, %v293
    %v490 = vpack.c.b16 %v296, %v294
    %v491 = vpack.c.b16 %v299, %v297
    %v492 = vpack.c.b16 %v300, %v298
    %v493 = vpack.c.b16 %v303, %v301
    %v494 = vpack.c.b16 %v304, %v302
    %v495 = vpack.c.b16 %v307, %v305
    %v496 = vpack.c.b16 %v308, %v306
    %v497 = vpack.c.b16 %v311, %v309
    %v498 = vpack.c.b16 %v312, %v310
    %v499 = vpack.c.b16 %v315, %v313
    %v500 = vpack.c.b16 %v316, %v314
    %v501 = vpack.c.b16 %v319, %v317
    %v502 = vpack.c.b16 %v320, %v318
    %v503 = vpack.c.b16 %v323, %v321
    %v504 = vpack.c.b16 %v324, %v322
    %v505 = vpack.c.b16 %v327, %v325
    %v506 = vpack.c.b16 %v328, %v326
    %v507 = vpack.c.b16 %v331, %v329
    %v508 = vpack.c.b16 %v332, %v330
    %v509 = vpack.c.b16 %v335, %v333
    %v510 = vpack.c.b16 %v336, %v334
    %v511 = vpack.c.b16 %v339, %v337
    %v512 = vpack.c.b16 %v340, %v338
    %v513 = vpack.c.b16 %v343, %v341
    %v514 = vpack.c.b16 %v344, %v342
    %v515 = vpack.c.b16 %v347, %v345
    %v516 = vpack.c.b16 %v348, %v346
    %v517 = vpack.c.b16 %v351, %v349
    %v518 = vpack.c.b16 %v352, %v350
    %v519 = vpack.c.b16 %v355, %v353
    %v520 = vpack.c.b16 %v356, %v354
    %v521 = vpack.c.b16 %v359, %v357
    %v522 = vpack.c.b16 %v360, %v358
    %v523 = vpack.c.b16 %v363, %v361
    %v524 = vpack.c.b16 %v364, %v362
    %v525 = vpack.c.b16 %v367, %v365
    %v526 = vpack.c.b16 %v368, %v366
    %v527 = vpack.c.b16 %v371, %v369
    %v528 = vpack.c.b16 %v372, %v370
    %v529 = vpack.c.b16 %v375, %v373
    %v530 = vpack.c.b16 %v376, %v374
    %v531 = vpack.c.b16 %v379, %v377
    %v532 = vpack.c.b16 %v380, %v378
    %v533 = vpack.c.b16 %v383, %v381
    %v534 = vpack.c.b16 %v384, %v382
    %v535 = vpack.c.b16 %v387, %v385
    %v536 = vpack.c.b16 %v388, %v386
    %v537 = vpack.c.b16 %v391, %v389
    %v538 = vpack.c.b16 %v392, %v390
    %v539 = vpack.c.b16 %v395, %v393
    %v540 = vpack.c.b16 %v396, %v394
    %v541 = vpack.c.b16 %v399, %v397
    %v542 = vpack.c.b16 %v400, %v398
    %v543 = vpack.c.b16 %v403, %v401
    %v544 = vpack.c.b16 %v404, %v402
    %v545 = vpack.c.b16 %v407, %v405
    %v546 = vpack.c.b16 %v408, %v406
    %v547 = vpack.c.b16 %v411, %v409
    %v548 = vpack.c.b16 %v412, %v410
    %v549 = vpack.c.b16 %v415, %v413
    %v550 = vpack.c.b16 %v416, %v414
    %v551 = vpack.c.b16 %v419, %v417
    %v552 = vpack.c.b16 %v420, %v418
    %v553 = vpack.c.b16 %v423, %v421
    %v554 = vpack.c.b16 %v424, %v422
    %v555 = vpack.c.b16 %v427, %v425
    %v556 = vpack.c.b16 %v428, %v426
    %v557 = vpack.c.b16 %v431, %v429
    %v558 = vpack.c.b16 %v432, %v430
    %v559 = vpack.c.b16 %v435, %v433
    %v560 = vpack.c.b16 %v436, %v434
    %v561 = vpack.c.b16 %v439, %v437
    %v562 = vpack.c.b16 %v440, %v438
    %v563 = vpack.c.b16 %v443, %v441
    %v564 = vpack.c.b16 %v444, %v442
    %v565 = vpack.c.b16 %v447, %v445
    %v566 = vpack.c.b16 %v448, %v446
    %v567 = vpack.c.b16 %v451, %v449
    %v568 = vpack.c.b16 %v452, %v450
    %v569 = vpack.c.b16 %v455, %v453
    %v570 = vpack.c.b16 %v456, %v454
    %v571 = vpack.c.b16 %v459, %v457
    %v572 = vpack.c.b16 %v460, %v458
    %v573 = vpack.c.b16 %v463, %v461
    %v574 = vpack.c.b16 %v464, %v462
    %v575 = vpack.c.b16 %v467, %v465
    %v576 = vpack.c.b16 %v468, %v466
    %v577 = vpack.c.b16 %v471, %v469
    %v578 = vpack.c.b16 %v472, %v470
    %v579 = vpack.c.b16 %v475, %v473
    %v580 = vpack.c.b16 %v476, %v474
    %v581 = vpack.c.b16 %v479, %v477
    %v582 = vpack.c.b16 %v480, %v478
    %v583 = vpack.c.b16 %v483, %v481
    %v584 = vpack.c.b16 %v484, %v482
    %v585 = vpack.c.b16 %v487, %v485
    %v586 = vpack.c.b16 %v488, %v486
    %vm685 = vcmask 130048
    %v687 = vsel %vm685, %v188, 0
    %689 = vmatprep.subr.bf16.mxu0 %v490
    %690 = vmatpush1.bf16.msra.mxu0 %v489
    %691 = vmatprep.subr.bf16.mxu0 %v492
    %692 = vmatpush1.bf16.msra.mxu0 %v491
    %693 = vmatprep.subr.bf16.mxu0 %v494
    %694 = vmatpush1.bf16.msra.mxu0 %v493
    %695 = vmatprep.subr.bf16.mxu0 %v496
    %696 = vmatpush1.bf16.msra.mxu0 %v495
    %697 = vmatprep.subr.bf16.mxu0 %v498
    %698 = vmatpush1.bf16.msra.mxu0 %v497
    %699 = vmatprep.subr.bf16.mxu0 %v500
    %700 = vmatpush1.bf16.msra.mxu0 %v499
    %701 = vmatprep.subr.bf16.mxu0 %v502
    %702 = vmatpush1.bf16.msra.mxu0 %v501
    %703 = vmatprep.subr.bf16.mxu0 %v504
    %704 = vmatpush1.bf16.msra.mxu0 %v503
    %705 = vmatprep.subr.bf16.mxu0 %v506
    %706 = vmatpush1.bf16.msra.mxu0 %v505
    %707 = vmatprep.subr.bf16.mxu0 %v508
    %708 = vmatpush1.bf16.msra.mxu0 %v507
    %709 = vmatprep.subr.bf16.mxu0 %v510
    %710 = vmatpush1.bf16.msra.mxu0 %v509
    %711 = vmatprep.subr.bf16.mxu0 %v512
    %712 = vmatpush1.bf16.msra.mxu0 %v511
    %713 = vmatprep.subr.bf16.mxu0 %v514
    %714 = vmatpush1.bf16.msra.mxu0 %v513
    %715 = vmatprep.subr.bf16.mxu0 %v516
    %716 = vmatpush1.bf16.msra.mxu0 %v515
    %717 = vmatprep.subr.bf16.mxu0 %v518
    %718 = vmatpush1.bf16.msra.mxu0 %v517
    %719 = vmatprep.subr.bf16.mxu0 %v520
    %720 = vmatpush1.bf16.msra.mxu0 %v519
    %721 = vmatprep.mubr.bf16.mxu0 %v183
    %722 = vmatmul.mubr.bf16.gmra.mrb[0].mxu0 %v182
    %v723 = vpop.f32.mrb[0].mxu0
    %v724 = vadd.f32 %v153, %v723
    %v725 = vpop.f32.mrb[0].mxu0
    %v726 = vadd.f32 %v153, %v725
    %v727 = vpop.f32.mrb[0].mxu0
    %v728 = vadd.f32 %v158, %v727
    %v729 = vpop.f32.mrb[0].mxu0
    %v730 = vadd.f32 %v158, %v729
    %731 = vdwg.mxu0
    %732 = vmatprep.subr.bf16.mxu0 %v522
    %733 = vmatpush1.bf16.msra.mxu0 %v521
    %734 = vmatprep.subr.bf16.mxu0 %v524
    %735 = vmatpush1.bf16.msra.mxu0 %v523
    %736 = vmatprep.subr.bf16.mxu0 %v526
    %737 = vmatpush1.bf16.msra.mxu0 %v525
    %738 = vmatprep.subr.bf16.mxu0 %v528
    %739 = vmatpush1.bf16.msra.mxu0 %v527
    %740 = vmatprep.subr.bf16.mxu0 %v530
    %741 = vmatpush1.bf16.msra.mxu0 %v529
    %742 = vmatprep.subr.bf16.mxu0 %v532
    %743 = vmatpush1.bf16.msra.mxu0 %v531
    %744 = vmatprep.subr.bf16.mxu0 %v534
    %745 = vmatpush1.bf16.msra.mxu0 %v533
    %746 = vmatprep.subr.bf16.mxu0 %v536
    %747 = vmatpush1.bf16.msra.mxu0 %v535
    %748 = vmatprep.subr.bf16.mxu0 %v538
    %749 = vmatpush1.bf16.msra.mxu0 %v537
    %750 = vmatprep.subr.bf16.mxu0 %v540
    %751 = vmatpush1.bf16.msra.mxu0 %v539
    %752 = vmatprep.subr.bf16.mxu0 %v542
    %753 = vmatpush1.bf16.msra.mxu0 %v541
    %754 = vmatprep.subr.bf16.mxu0 %v544
    %755 = vmatpush1.bf16.msra.mxu0 %v543
    %756 = vmatprep.subr.bf16.mxu0 %v546
    %757 = vmatpush1.bf16.msra.mxu0 %v545
    %758 = vmatprep.subr.bf16.mxu0 %v548
    %759 = vmatpush1.bf16.msra.mxu0 %v547
    %760 = vmatprep.subr.bf16.mxu0 %v550
    %761 = vmatpush1.bf16.msra.mxu0 %v549
    %762 = vmatprep.subr.bf16.mxu0 %v552
    %763 = vmatpush1.bf16.msra.mxu0 %v551
    %764 = vmatprep.mubr.bf16.mxu0 %v185
    %765 = vmatmul.mubr.bf16.gmra.mrb[0].mxu0 %v184
    %v766 = vpop.f32.mrb[0].mxu0
    %v767 = vadd.f32 %v724, %v766
    %v768 = vpop.f32.mrb[0].mxu0
    %v769 = vadd.f32 %v726, %v768
    %v770 = vpop.f32.mrb[0].mxu0
    %v771 = vadd.f32 %v728, %v770
    %v772 = vpop.f32.mrb[0].mxu0
    %v773 = vadd.f32 %v730, %v772
    %774 = vdwg.mxu0
    %775 = vmatprep.subr.bf16.mxu0 %v554
    %776 = vmatpush1.bf16.msra.mxu0 %v553
    %777 = vmatprep.subr.bf16.mxu0 %v556
    %778 = vmatpush1.bf16.msra.mxu0 %v555
    %779 = vmatprep.subr.bf16.mxu0 %v558
    %780 = vmatpush1.bf16.msra.mxu0 %v557
    %781 = vmatprep.subr.bf16.mxu0 %v560
    %782 = vmatpush1.bf16.msra.mxu0 %v559
    %783 = vmatprep.subr.bf16.mxu0 %v562
    %784 = vmatpush1.bf16.msra.mxu0 %v561
    %785 = vmatprep.subr.bf16.mxu0 %v564
    %786 = vmatpush1.bf16.msra.mxu0 %v563
    %787 = vmatprep.subr.bf16.mxu0 %v566
    %788 = vmatpush1.bf16.msra.mxu0 %v565
    %789 = vmatprep.subr.bf16.mxu0 %v568
    %790 = vmatpush1.bf16.msra.mxu0 %v567
    %791 = vmatprep.subr.bf16.mxu0 %v570
    %792 = vmatpush1.bf16.msra.mxu0 %v569
    %793 = vmatprep.subr.bf16.mxu0 %v572
    %794 = vmatpush1.bf16.msra.mxu0 %v571
    %795 = vmatprep.subr.bf16.mxu0 %v574
    %796 = vmatpush1.bf16.msra.mxu0 %v573
    %797 = vmatprep.subr.bf16.mxu0 %v576
    %798 = vmatpush1.bf16.msra.mxu0 %v575
    %799 = vmatprep.subr.bf16.mxu0 %v578
    %800 = vmatpush1.bf16.msra.mxu0 %v577
    %801 = vmatprep.subr.bf16.mxu0 %v580
    %802 = vmatpush1.bf16.msra.mxu0 %v579
    %803 = vmatprep.subr.bf16.mxu0 %v582
    %804 = vmatpush1.bf16.msra.mxu0 %v581
    %805 = vmatprep.subr.bf16.mxu0 %v584
    %806 = vmatpush1.bf16.msra.mxu0 %v583
    %807 = vmatprep.mubr.bf16.mxu0 %v187
    %808 = vmatmul.mubr.bf16.gmra.mrb[0].mxu0 %v186
    %v809 = vpop.f32.mrb[0].mxu0
    %v810 = vadd.f32 %v767, %v809
    %v811 = vpop.f32.mrb[0].mxu0
    %v812 = vadd.f32 %v769, %v811
    %v813 = vpop.f32.mrb[0].mxu0
    %v814 = vadd.f32 %v771, %v813
    %v815 = vpop.f32.mrb[0].mxu0
    %v816 = vadd.f32 %v773, %v815
    %817 = vdwg.mxu0
    %818 = vmatprep.subr.bf16.mxu0 %v586
    %819 = vmatpush1.bf16.msra.mxu0 %v585
    %820 = vmatprep.subr.bf16.mxu0 0
    %821 = vmatpush1.bf16.msra.mxu0 0
    %822 = vmatprep.subr.bf16.mxu0 0
    %823 = vmatpush1.bf16.msra.mxu0 0
    %824 = vmatprep.subr.bf16.mxu0 0
    %825 = vmatpush1.bf16.msra.mxu0 0
    %826 = vmatprep.subr.bf16.mxu0 0
    %827 = vmatpush1.bf16.msra.mxu0 0
    %828 = vmatprep.subr.bf16.mxu0 0
    %829 = vmatpush1.bf16.msra.mxu0 0
    %830 = vmatprep.subr.bf16.mxu0 0
    %831 = vmatpush1.bf16.msra.mxu0 0
    %832 = vmatprep.subr.bf16.mxu0 0
    %833 = vmatpush1.bf16.msra.mxu0 0
    %834 = vmatprep.subr.bf16.mxu0 0
    %835 = vmatpush1.bf16.msra.mxu0 0
    %836 = vmatprep.subr.bf16.mxu0 0
    %837 = vmatpush1.bf16.msra.mxu0 0
    %838 = vmatprep.subr.bf16.mxu0 0
    %839 = vmatpush1.bf16.msra.mxu0 0
    %840 = vmatprep.subr.bf16.mxu0 0
    %841 = vmatpush1.bf16.msra.mxu0 0
    %842 = vmatprep.subr.bf16.mxu0 0
    %843 = vmatpush1.bf16.msra.mxu0 0
    %844 = vmatprep.subr.bf16.mxu0 0
    %845 = vmatpush1.bf16.msra.mxu0 0
    %846 = vmatprep.subr.bf16.mxu0 0
    %847 = vmatpush1.bf16.msra.mxu0 0
    %848 = vmatprep.subr.bf16.mxu0 0
    %849 = vmatpush1.bf16.msra.mxu0 0
    %850 = vmatprep.mubr.bf16.mxu0 0
    %851 = vmatmul.mubr.bf16.gmra.mrb[0].mxu0 %v687
    %v852 = vpop.f32.mrb[0].mxu0
    %v853 = vadd.f32 %v810, %v852
    %v854 = vpop.f32.mrb[0].mxu0
    %v855 = vadd.f32 %v812, %v854
    %v856 = vpop.f32.mrb[0].mxu0
    %v857 = vadd.f32 %v814, %v856
    %v858 = vpop.f32.mrb[0].mxu0
    %v859 = vadd.f32 %v816, %v858
    %860 = vdwg.mxu0
    %v861 = vld [vmem:[%s3] sm:$0xf]
    %v862 = vld [vmem:[%s3 + $0x4] sm:$0x1]
    %v863 = vld [vmem:[%s4] sm:$0xff]
    %v864 = vld [vmem:[%s4 + $0x8] sm:$0x3]
    %v865 = vpack.c.bf16 %v857, %v853
    %867 = vset.pattern.permute.xlu0 0
    %868 = vperm.xlu0 %867, %v863
    %v869 = vpop.permute.xlu0 %868
    %872 = vset.pattern.permute.xlu0 0
    %873 = vperm.xlu0 %872, %v864
    %v874 = vpop.permute.xlu0 %873
    %v878 = vunpack.c.l.b16 %v861
    %v879 = vunpack.c.l.b16 %v862
    %v880 = vpack.c.b16 %v879, %v878
    %vm881 = vcmask 80896
    %v883 = vsel %vm881, %v880, 0
    %vm885 = vcmask 1044480
    %v887 = vsel %vm885, %v865, 0
    %889 = vmatprep.subr.bf16.mxu0 0
    %890 = vmatpush1.bf16.msra.mxu0 %v887
    %891 = vmatprep.subr.bf16.mxu0 0
    %892 = vmatpush1.bf16.msra.mxu0 0
    %893 = vmatprep.subr.bf16.mxu0 0
    %894 = vmatpush1.bf16.msra.mxu0 0
    %895 = vmatprep.subr.bf16.mxu0 0
    %896 = vmatpush1.bf16.msra.mxu0 0
    %897 = vmatprep.subr.bf16.mxu0 0
    %898 = vmatpush1.bf16.msra.mxu0 0
    %899 = vmatprep.subr.bf16.mxu0 0
    %900 = vmatpush1.bf16.msra.mxu0 0
    %901 = vmatprep.subr.bf16.mxu0 0
    %902 = vmatpush1.bf16.msra.mxu0 0
    %903 = vmatprep.subr.bf16.mxu0 0
    %904 = vmatpush1.bf16.msra.mxu0 0
    %905 = vmatprep.subr.bf16.mxu0 0
    %906 = vmatpush1.bf16.msra.mxu0 0
    %907 = vmatprep.subr.bf16.mxu0 0
    %908 = vmatpush1.bf16.msra.mxu0 0
    %909 = vmatprep.subr.bf16.mxu0 0
    %910 = vmatpush1.bf16.msra.mxu0 0
    %911 = vmatprep.subr.bf16.mxu0 0
    %912 = vmatpush1.bf16.msra.mxu0 0
    %913 = vmatprep.subr.bf16.mxu0 0
    %914 = vmatpush1.bf16.msra.mxu0 0
    %915 = vmatprep.subr.bf16.mxu0 0
    %916 = vmatpush1.bf16.msra.mxu0 0
    %917 = vmatprep.subr.bf16.mxu0 0
    %918 = vmatpush1.bf16.msra.mxu0 0
    %919 = vmatprep.subr.bf16.mxu0 0
    %920 = vmatpush1.bf16.msra.mxu0 0
    %921 = vmatprep.mubr.bf16.mxu0 0
    %922 = vmatmul.mubr.bf16.gmra.mrb[0].mxu0 %v883
    %v923 = vpop.f32.mrb[0].mxu0
    %v924 = vadd.f32 %v869, %v923
    %v925 = vpop.f32.mrb[0].mxu0
    %v926 = vpop.f32.mrb[0].mxu0
    %v927 = vadd.f32 %v874, %v926
    %v928 = vpop.f32.mrb[0].mxu0
    %929 = vdwg.mxu0
    %v930 = vpack.c.bf16 %v859, %v855
    %v932 = vsel %vm885, %v930, 0
    %934 = vmatprep.subr.bf16.mxu0 0
    %935 = vmatpush1.bf16.msra.mxu0 %v932
    %936 = vmatprep.subr.bf16.mxu0 0
    %937 = vmatpush1.bf16.msra.mxu0 0
    %938 = vmatprep.subr.bf16.mxu0 0
    %939 = vmatpush1.bf16.msra.mxu0 0
    %940 = vmatprep.subr.bf16.mxu0 0
    %941 = vmatpush1.bf16.msra.mxu0 0
    %942 = vmatprep.subr.bf16.mxu0 0
    %943 = vmatpush1.bf16.msra.mxu0 0
    %944 = vmatprep.subr.bf16.mxu0 0
    %945 = vmatpush1.bf16.msra.mxu0 0
    %946 = vmatprep.subr.bf16.mxu0 0
    %947 = vmatpush1.bf16.msra.mxu0 0
    %948 = vmatprep.subr.bf16.mxu0 0
    %949 = vmatpush1.bf16.msra.mxu0 0
    %950 = vmatprep.subr.bf16.mxu0 0
    %951 = vmatpush1.bf16.msra.mxu0 0
    %952 = vmatprep.subr.bf16.mxu0 0
    %953 = vmatpush1.bf16.msra.mxu0 0
    %954 = vmatprep.subr.bf16.mxu0 0
    %955 = vmatpush1.bf16.msra.mxu0 0
    %956 = vmatprep.subr.bf16.mxu0 0
    %957 = vmatpush1.bf16.msra.mxu0 0
    %958 = vmatprep.subr.bf16.mxu0 0
    %959 = vmatpush1.bf16.msra.mxu0 0
    %960 = vmatprep.subr.bf16.mxu0 0
    %961 = vmatpush1.bf16.msra.mxu0 0
    %962 = vmatprep.subr.bf16.mxu0 0
    %963 = vmatpush1.bf16.msra.mxu0 0
    %964 = vmatprep.subr.bf16.mxu0 0
    %965 = vmatpush1.bf16.msra.mxu0 0
    %966 = vmatprep.mubr.bf16.mxu0 0
    %967 = vmatmul.mubr.bf16.gmra.mrb[0].mxu0 %v883
    %v968 = vpop.f32.mrb[0].mxu0
    %v969 = vadd.f32 %v869, %v968
    %v970 = vpop.f32.mrb[0].mxu0
    %v971 = vpop.f32.mrb[0].mxu0
    %v972 = vadd.f32 %v874, %v971
    %v973 = vpop.f32.mrb[0].mxu0
    %974 = vdwg.mxu0
    %v975 = vmax.f32 %v924, 0.0
    %v976 = vmax.f32 %v927, 0.0
    %v977 = vadd.f32 %v975, %v853
    %v978 = vadd.f32 %v976, %v857
    %v979 = vmax.f32 %v969, 0.0
    %v980 = vmax.f32 %v972, 0.0
    %v981 = vadd.f32 %v979, %v855
    %v982 = vadd.f32 %v980, %v859
    %s983 = scalar_lea.vmem %s3, 8
    %v984 = vld [vmem:[%s983] sm:$0xf]
    %v985 = vld [vmem:[%s983 + $0x4] sm:$0x1]
    %s986 = scalar_lea.vmem %s4, 16
    %v987 = vld [vmem:[%s986] sm:$0xff]
    %v988 = vld [vmem:[%s986 + $0x8] sm:$0x3]
    %v989 = vpack.c.bf16 %v978, %v977
    %991 = vset.pattern.permute.xlu0 0
    %992 = vperm.xlu0 %991, %v987
    %v993 = vpop.permute.xlu0 %992
    %996 = vset.pattern.permute.xlu0 0
    %997 = vperm.xlu0 %996, %v988
    %v998 = vpop.permute.xlu0 %997
    %v1002 = vunpack.c.l.b16 %v984
    %v1003 = vunpack.c.l.b16 %v985
    %v1004 = vpack.c.b16 %v1003, %v1002
    %v1006 = vsel %vm881, %v1004, 0
    %v1009 = vsel %vm885, %v989, 0
    %1011 = vmatprep.subr.bf16.mxu0 0
    %1012 = vmatpush1.bf16.msra.mxu0 %v1009
    %1013 = vmatprep.subr.bf16.mxu0 0
    %1014 = vmatpush1.bf16.msra.mxu0 0
    %1015 = vmatprep.subr.bf16.mxu0 0
    %1016 = vmatpush1.bf16.msra.mxu0 0
    %1017 = vmatprep.subr.bf16.mxu0 0
    %1018 = vmatpush1.bf16.msra.mxu0 0
    %1019 = vmatprep.subr.bf16.mxu0 0
    %1020 = vmatpush1.bf16.msra.mxu0 0
    %1021 = vmatprep.subr.bf16.mxu0 0
    %1022 = vmatpush1.bf16.msra.mxu0 0
    %1023 = vmatprep.subr.bf16.mxu0 0
    %1024 = vmatpush1.bf16.msra.mxu0 0
    %1025 = vmatprep.subr.bf16.mxu0 0
    %1026 = vmatpush1.bf16.msra.mxu0 0
    %1027 = vmatprep.subr.bf16.mxu0 0
    %1028 = vmatpush1.bf16.msra.mxu0 0
    %1029 = vmatprep.subr.bf16.mxu0 0
    %1030 = vmatpush1.bf16.msra.mxu0 0
    %1031 = vmatprep.subr.bf16.mxu0 0
    %1032 = vmatpush1.bf16.msra.mxu0 0
    %1033 = vmatprep.subr.bf16.mxu0 0
    %1034 = vmatpush1.bf16.msra.mxu0 0
    %1035 = vmatprep.subr.bf16.mxu0 0
    %1036 = vmatpush1.bf16.msra.mxu0 0
    %1037 = vmatprep.subr.bf16.mxu0 0
    %1038 = vmatpush1.bf16.msra.mxu0 0
    %1039 = vmatprep.subr.bf16.mxu0 0
    %1040 = vmatpush1.bf16.msra.mxu0 0
    %1041 = vmatprep.subr.bf16.mxu0 0
    %1042 = vmatpush1.bf16.msra.mxu0 0
    %1043 = vmatprep.mubr.bf16.mxu0 0
    %1044 = vmatmul.mubr.bf16.gmra.mrb[0].mxu0 %v1006
    %v1045 = vpop.f32.mrb[0].mxu0
    %v1046 = vadd.f32 %v993, %v1045
    %v1047 = vpop.f32.mrb[0].mxu0
    %v1048 = vpop.f32.mrb[0].mxu0
    %v1049 = vadd.f32 %v998, %v1048
    %v1050 = vpop.f32.mrb[0].mxu0
    %1051 = vdwg.mxu0
    %v1052 = vpack.c.bf16 %v982, %v981
    %v1054 = vsel %vm885, %v1052, 0
    %1056 = vmatprep.subr.bf16.mxu0 0
    %1057 = vmatpush1.bf16.msra.mxu0 %v1054
    %1058 = vmatprep.subr.bf16.mxu0 0
    %1059 = vmatpush1.bf16.msra.mxu0 0
    %1060 = vmatprep.subr.bf16.mxu0 0
    %1061 = vmatpush1.bf16.msra.mxu0 0
    %1062 = vmatprep.subr.bf16.mxu0 0
    %1063 = vmatpush1.bf16.msra.mxu0 0
    %1064 = vmatprep.subr.bf16.mxu0 0
    %1065 = vmatpush1.bf16.msra.mxu0 0
    %1066 = vmatprep.subr.bf16.mxu0 0
    %1067 = vmatpush1.bf16.msra.mxu0 0
    %1068 = vmatprep.subr.bf16.mxu0 0
    %1069 = vmatpush1.bf16.msra.mxu0 0
    %1070 = vmatprep.subr.bf16.mxu0 0
    %1071 = vmatpush1.bf16.msra.mxu0 0
    %1072 = vmatprep.subr.bf16.mxu0 0
    %1073 = vmatpush1.bf16.msra.mxu0 0
    %1074 = vmatprep.subr.bf16.mxu0 0
    %1075 = vmatpush1.bf16.msra.mxu0 0
    %1076 = vmatprep.subr.bf16.mxu0 0
    %1077 = vmatpush1.bf16.msra.mxu0 0
    %1078 = vmatprep.subr.bf16.mxu0 0
    %1079 = vmatpush1.bf16.msra.mxu0 0
    %1080 = vmatprep.subr.bf16.mxu0 0
    %1081 = vmatpush1.bf16.msra.mxu0 0
    %1082 = vmatprep.subr.bf16.mxu0 0
    %1083 = vmatpush1.bf16.msra.mxu0 0
    %1084 = vmatprep.subr.bf16.mxu0 0
    %1085 = vmatpush1.bf16.msra.mxu0 0
    %1086 = vmatprep.subr.bf16.mxu0 0
    %1087 = vmatpush1.bf16.msra.mxu0 0
    %1088 = vmatprep.mubr.bf16.mxu0 0
    %1089 = vmatmul.mubr.bf16.gmra.mrb[0].mxu0 %v1006
    %v1090 = vpop.f32.mrb[0].mxu0
    %v1091 = vadd.f32 %v993, %v1090
    %v1092 = vpop.f32.mrb[0].mxu0
    %v1093 = vpop.f32.mrb[0].mxu0
    %v1094 = vadd.f32 %v998, %v1093
    %v1095 = vpop.f32.mrb[0].mxu0
    %1096 = vdwg.mxu0
    %v1097 = vmax.f32 %v1046, 0.0
    %v1098 = vmax.f32 %v1049, 0.0
    %v1099 = vadd.f32 %v1097, %v977
    %v1100 = vadd.f32 %v1098, %v978
    %v1101 = vmax.f32 %v1091, 0.0
    %v1102 = vmax.f32 %v1094, 0.0
    %v1103 = vadd.f32 %v1101, %v981
    %v1104 = vadd.f32 %v1102, %v982
    %s1105 = scalar_lea.vmem %s3, 16
    %v1106 = vld [vmem:[%s1105] sm:$0xf]
    %v1107 = vld [vmem:[%s1105 + $0x4] sm:$0x1]
    %s1108 = scalar_lea.vmem %s4, 32
    %v1109 = vld [vmem:[%s1108] sm:$0xff]
    %v1110 = vld [vmem:[%s1108 + $0x8] sm:$0x3]
    %v1111 = vpack.c.bf16 %v1100, %v1099
    %1113 = vset.pattern.permute.xlu0 0
    %1114 = vperm.xlu0 %1113, %v1109
    %v1115 = vpop.permute.xlu0 %1114
    %1118 = vset.pattern.permute.xlu0 0
    %1119 = vperm.xlu0 %1118, %v1110
    %v1120 = vpop.permute.xlu0 %1119
    %v1124 = vunpack.c.l.b16 %v1106
    %v1125 = vunpack.c.l.b16 %v1107
    %v1126 = vpack.c.b16 %v1125, %v1124
    %v1128 = vsel %vm881, %v1126, 0
    %v1131 = vsel %vm885, %v1111, 0
    %1133 = vmatprep.subr.bf16.mxu0 0
    %1134 = vmatpush1.bf16.msra.mxu0 %v1131
    %1135 = vmatprep.subr.bf16.mxu0 0
    %1136 = vmatpush1.bf16.msra.mxu0 0
    %1137 = vmatprep.subr.bf16.mxu0 0
    %1138 = vmatpush1.bf16.msra.mxu0 0
    %1139 = vmatprep.subr.bf16.mxu0 0
    %1140 = vmatpush1.bf16.msra.mxu0 0
    %1141 = vmatprep.subr.bf16.mxu0 0
    %1142 = vmatpush1.bf16.msra.mxu0 0
    %1143 = vmatprep.subr.bf16.mxu0 0
    %1144 = vmatpush1.bf16.msra.mxu0 0
    %1145 = vmatprep.subr.bf16.mxu0 0
    %1146 = vmatpush1.bf16.msra.mxu0 0
    %1147 = vmatprep.subr.bf16.mxu0 0
    %1148 = vmatpush1.bf16.msra.mxu0 0
    %1149 = vmatprep.subr.bf16.mxu0 0
    %1150 = vmatpush1.bf16.msra.mxu0 0
    %1151 = vmatprep.subr.bf16.mxu0 0
    %1152 = vmatpush1.bf16.msra.mxu0 0
    %1153 = vmatprep.subr.bf16.mxu0 0
    %1154 = vmatpush1.bf16.msra.mxu0 0
    %1155 = vmatprep.subr.bf16.mxu0 0
    %1156 = vmatpush1.bf16.msra.mxu0 0
    %1157 = vmatprep.subr.bf16.mxu0 0
    %1158 = vmatpush1.bf16.msra.mxu0 0
    %1159 = vmatprep.subr.bf16.mxu0 0
    %1160 = vmatpush1.bf16.msra.mxu0 0
    %1161 = vmatprep.subr.bf16.mxu0 0
    %1162 = vmatpush1.bf16.msra.mxu0 0
    %1163 = vmatprep.subr.bf16.mxu0 0
    %1164 = vmatpush1.bf16.msra.mxu0 0
    %1165 = vmatprep.mubr.bf16.mxu0 0
    %1166 = vmatmul.mubr.bf16.gmra.mrb[0].mxu0 %v1128
    %v1167 = vpop.f32.mrb[0].mxu0
    %v1168 = vadd.f32 %v1115, %v1167
    %v1169 = vpop.f32.mrb[0].mxu0
    %v1170 = vpop.f32.mrb[0].mxu0
    %v1171 = vadd.f32 %v1120, %v1170
    %v1172 = vpop.f32.mrb[0].mxu0
    %1173 = vdwg.mxu0
    %v1174 = vpack.c.bf16 %v1104, %v1103
    %v1176 = vsel %vm885, %v1174, 0
    %1178 = vmatprep.subr.bf16.mxu0 0
    %1179 = vmatpush1.bf16.msra.mxu0 %v1176
    %1180 = vmatprep.subr.bf16.mxu0 0
    %1181 = vmatpush1.bf16.msra.mxu0 0
    %1182 = vmatprep.subr.bf16.mxu0 0
    %1183 = vmatpush1.bf16.msra.mxu0 0
    %1184 = vmatprep.subr.bf16.mxu0 0
    %1185 = vmatpush1.bf16.msra.mxu0 0
    %1186 = vmatprep.subr.bf16.mxu0 0
    %1187 = vmatpush1.bf16.msra.mxu0 0
    %1188 = vmatprep.subr.bf16.mxu0 0
    %1189 = vmatpush1.bf16.msra.mxu0 0
    %1190 = vmatprep.subr.bf16.mxu0 0
    %1191 = vmatpush1.bf16.msra.mxu0 0
    %1192 = vmatprep.subr.bf16.mxu0 0
    %1193 = vmatpush1.bf16.msra.mxu0 0
    %1194 = vmatprep.subr.bf16.mxu0 0
    %1195 = vmatpush1.bf16.msra.mxu0 0
    %1196 = vmatprep.subr.bf16.mxu0 0
    %1197 = vmatpush1.bf16.msra.mxu0 0
    %1198 = vmatprep.subr.bf16.mxu0 0
    %1199 = vmatpush1.bf16.msra.mxu0 0
    %1200 = vmatprep.subr.bf16.mxu0 0
    %1201 = vmatpush1.bf16.msra.mxu0 0
    %1202 = vmatprep.subr.bf16.mxu0 0
    %1203 = vmatpush1.bf16.msra.mxu0 0
    %1204 = vmatprep.subr.bf16.mxu0 0
    %1205 = vmatpush1.bf16.msra.mxu0 0
    %1206 = vmatprep.subr.bf16.mxu0 0
    %1207 = vmatpush1.bf16.msra.mxu0 0
    %1208 = vmatprep.subr.bf16.mxu0 0
    %1209 = vmatpush1.bf16.msra.mxu0 0
    %1210 = vmatprep.mubr.bf16.mxu0 0
    %1211 = vmatmul.mubr.bf16.gmra.mrb[0].mxu0 %v1128
    %v1212 = vpop.f32.mrb[0].mxu0
    %v1213 = vadd.f32 %v1115, %v1212
    %v1214 = vpop.f32.mrb[0].mxu0
    %v1215 = vpop.f32.mrb[0].mxu0
    %v1216 = vadd.f32 %v1120, %v1215
    %v1217 = vpop.f32.mrb[0].mxu0
    %1218 = vdwg.mxu0
    %v1219 = vmax.f32 %v1168, 0.0
    %v1220 = vmax.f32 %v1171, 0.0
    %v1221 = vadd.f32 %v1219, %v1099
    %v1222 = vadd.f32 %v1220, %v1100
    %v1223 = vmax.f32 %v1213, 0.0
    %v1224 = vmax.f32 %v1216, 0.0
    %v1225 = vadd.f32 %v1223, %v1103
    %v1226 = vadd.f32 %v1224, %v1104
    %s1227 = scalar_lea.vmem %s3, 24
    %v1228 = vld [vmem:[%s1227] sm:$0xf]
    %v1229 = vld [vmem:[%s1227 + $0x4] sm:$0x1]
    %s1230 = scalar_lea.vmem %s4, 48
    %v1231 = vld [vmem:[%s1230] sm:$0xff]
    %v1232 = vld [vmem:[%s1230 + $0x8] sm:$0x3]
    %v1233 = vpack.c.bf16 %v1222, %v1221
    %1235 = vset.pattern.permute.xlu0 0
    %1236 = vperm.xlu0 %1235, %v1231
    %v1237 = vpop.permute.xlu0 %1236
    %1240 = vset.pattern.permute.xlu0 0
    %1241 = vperm.xlu0 %1240, %v1232
    %v1242 = vpop.permute.xlu0 %1241
    %v1246 = vunpack.c.l.b16 %v1228
    %v1247 = vunpack.c.l.b16 %v1229
    %v1248 = vpack.c.b16 %v1247, %v1246
    %v1250 = vsel %vm881, %v1248, 0
    %v1253 = vsel %vm885, %v1233, 0
    %1255 = vmatprep.subr.bf16.mxu0 0
    %1256 = vmatpush1.bf16.msra.mxu0 %v1253
    %1257 = vmatprep.subr.bf16.mxu0 0
    %1258 = vmatpush1.bf16.msra.mxu0 0
    %1259 = vmatprep.subr.bf16.mxu0 0
    %1260 = vmatpush1.bf16.msra.mxu0 0
    %1261 = vmatprep.subr.bf16.mxu0 0
    %1262 = vmatpush1.bf16.msra.mxu0 0
    %1263 = vmatprep.subr.bf16.mxu0 0
    %1264 = vmatpush1.bf16.msra.mxu0 0
    %1265 = vmatprep.subr.bf16.mxu0 0
    %1266 = vmatpush1.bf16.msra.mxu0 0
    %1267 = vmatprep.subr.bf16.mxu0 0
    %1268 = vmatpush1.bf16.msra.mxu0 0
    %1269 = vmatprep.subr.bf16.mxu0 0
    %1270 = vmatpush1.bf16.msra.mxu0 0
    %1271 = vmatprep.subr.bf16.mxu0 0
    %1272 = vmatpush1.bf16.msra.mxu0 0
    %1273 = vmatprep.subr.bf16.mxu0 0
    %1274 = vmatpush1.bf16.msra.mxu0 0
    %1275 = vmatprep.subr.bf16.mxu0 0
    %1276 = vmatpush1.bf16.msra.mxu0 0
    %1277 = vmatprep.subr.bf16.mxu0 0
    %1278 = vmatpush1.bf16.msra.mxu0 0
    %1279 = vmatprep.subr.bf16.mxu0 0
    %1280 = vmatpush1.bf16.msra.mxu0 0
    %1281 = vmatprep.subr.bf16.mxu0 0
    %1282 = vmatpush1.bf16.msra.mxu0 0
    %1283 = vmatprep.subr.bf16.mxu0 0
    %1284 = vmatpush1.bf16.msra.mxu0 0
    %1285 = vmatprep.subr.bf16.mxu0 0
    %1286 = vmatpush1.bf16.msra.mxu0 0
    %1287 = vmatprep.mubr.bf16.mxu0 0
    %1288 = vmatmul.mubr.bf16.gmra.mrb[0].mxu0 %v1250
    %v1289 = vpop.f32.mrb[0].mxu0
    %v1290 = vadd.f32 %v1237, %v1289
    %v1291 = vpop.f32.mrb[0].mxu0
    %v1292 = vpop.f32.mrb[0].mxu0
    %v1293 = vadd.f32 %v1242, %v1292
    %v1294 = vpop.f32.mrb[0].mxu0
    %1295 = vdwg.mxu0
    %v1296 = vpack.c.bf16 %v1226, %v1225
    %v1298 = vsel %vm885, %v1296, 0
    %1300 = vmatprep.subr.bf16.mxu0 0
    %1301 = vmatpush1.bf16.msra.mxu0 %v1298
    %1302 = vmatprep.subr.bf16.mxu0 0
    %1303 = vmatpush1.bf16.msra.mxu0 0
    %1304 = vmatprep.subr.bf16.mxu0 0
    %1305 = vmatpush1.bf16.msra.mxu0 0
    %1306 = vmatprep.subr.bf16.mxu0 0
    %1307 = vmatpush1.bf16.msra.mxu0 0
    %1308 = vmatprep.subr.bf16.mxu0 0
    %1309 = vmatpush1.bf16.msra.mxu0 0
    %1310 = vmatprep.subr.bf16.mxu0 0
    %1311 = vmatpush1.bf16.msra.mxu0 0
    %1312 = vmatprep.subr.bf16.mxu0 0
    %1313 = vmatpush1.bf16.msra.mxu0 0
    %1314 = vmatprep.subr.bf16.mxu0 0
    %1315 = vmatpush1.bf16.msra.mxu0 0
    %1316 = vmatprep.subr.bf16.mxu0 0
    %1317 = vmatpush1.bf16.msra.mxu0 0
    %1318 = vmatprep.subr.bf16.mxu0 0
    %1319 = vmatpush1.bf16.msra.mxu0 0
    %1320 = vmatprep.subr.bf16.mxu0 0
    %1321 = vmatpush1.bf16.msra.mxu0 0
    %1322 = vmatprep.subr.bf16.mxu0 0
    %1323 = vmatpush1.bf16.msra.mxu0 0
    %1324 = vmatprep.subr.bf16.mxu0 0
    %1325 = vmatpush1.bf16.msra.mxu0 0
    %1326 = vmatprep.subr.bf16.mxu0 0
    %1327 = vmatpush1.bf16.msra.mxu0 0
    %1328 = vmatprep.subr.bf16.mxu0 0
    %1329 = vmatpush1.bf16.msra.mxu0 0
    %1330 = vmatprep.subr.bf16.mxu0 0
    %1331 = vmatpush1.bf16.msra.mxu0 0
    %1332 = vmatprep.mubr.bf16.mxu0 0
    %1333 = vmatmul.mubr.bf16.gmra.mrb[0].mxu0 %v1250
    %v1334 = vpop.f32.mrb[0].mxu0
    %v1335 = vadd.f32 %v1237, %v1334
    %v1336 = vpop.f32.mrb[0].mxu0
    %v1337 = vpop.f32.mrb[0].mxu0
    %v1338 = vadd.f32 %v1242, %v1337
    %v1339 = vpop.f32.mrb[0].mxu0
    %1340 = vdwg.mxu0
    %v1341 = vmax.f32 %v1290, 0.0
    %v1342 = vmax.f32 %v1293, 0.0
    %v1343 = vadd.f32 %v1341, %v1221
    %v1344 = vadd.f32 %v1342, %v1222
    %v1345 = vmax.f32 %v1335, 0.0
    %v1346 = vmax.f32 %v1338, 0.0
    %v1347 = vadd.f32 %v1345, %v1225
    %v1348 = vadd.f32 %v1346, %v1226
    %s1349 = scalar_lea.vmem %s3, 32
    %v1350 = vld [vmem:[%s1349] sm:$0xf]
    %v1351 = vld [vmem:[%s1349 + $0x4] sm:$0x1]
    %s1352 = scalar_lea.vmem %s4, 64
    %v1353 = vld [vmem:[%s1352] sm:$0xff]
    %v1354 = vld [vmem:[%s1352 + $0x8] sm:$0x3]
    %v1355 = vpack.c.bf16 %v1344, %v1343
    %1357 = vset.pattern.permute.xlu0 0
    %1358 = vperm.xlu0 %1357, %v1353
    %v1359 = vpop.permute.xlu0 %1358
    %1362 = vset.pattern.permute.xlu0 0
    %1363 = vperm.xlu0 %1362, %v1354
    %v1364 = vpop.permute.xlu0 %1363
    %v1368 = vunpack.c.l.b16 %v1350
    %v1369 = vunpack.c.l.b16 %v1351
    %v1370 = vpack.c.b16 %v1369, %v1368
    %v1372 = vsel %vm881, %v1370, 0
    %v1375 = vsel %vm885, %v1355, 0
    %1377 = vmatprep.subr.bf16.mxu0 0
    %1378 = vmatpush1.bf16.msra.mxu0 %v1375
    %1379 = vmatprep.subr.bf16.mxu0 0
    %1380 = vmatpush1.bf16.msra.mxu0 0
    %1381 = vmatprep.subr.bf16.mxu0 0
    %1382 = vmatpush1.bf16.msra.mxu0 0
    %1383 = vmatprep.subr.bf16.mxu0 0
    %1384 = vmatpush1.bf16.msra.mxu0 0
    %1385 = vmatprep.subr.bf16.mxu0 0
    %1386 = vmatpush1.bf16.msra.mxu0 0
    %1387 = vmatprep.subr.bf16.mxu0 0
    %1388 = vmatpush1.bf16.msra.mxu0 0
    %1389 = vmatprep.subr.bf16.mxu0 0
    %1390 = vmatpush1.bf16.msra.mxu0 0
    %1391 = vmatprep.subr.bf16.mxu0 0
    %1392 = vmatpush1.bf16.msra.mxu0 0
    %1393 = vmatprep.subr.bf16.mxu0 0
    %1394 = vmatpush1.bf16.msra.mxu0 0
    %1395 = vmatprep.subr.bf16.mxu0 0
    %1396 = vmatpush1.bf16.msra.mxu0 0
    %1397 = vmatprep.subr.bf16.mxu0 0
    %1398 = vmatpush1.bf16.msra.mxu0 0
    %1399 = vmatprep.subr.bf16.mxu0 0
    %1400 = vmatpush1.bf16.msra.mxu0 0
    %1401 = vmatprep.subr.bf16.mxu0 0
    %1402 = vmatpush1.bf16.msra.mxu0 0
    %1403 = vmatprep.subr.bf16.mxu0 0
    %1404 = vmatpush1.bf16.msra.mxu0 0
    %1405 = vmatprep.subr.bf16.mxu0 0
    %1406 = vmatpush1.bf16.msra.mxu0 0
    %1407 = vmatprep.subr.bf16.mxu0 0
    %1408 = vmatpush1.bf16.msra.mxu0 0
    %1409 = vmatprep.mubr.bf16.mxu0 0
    %1410 = vmatmul.mubr.bf16.gmra.mrb[0].mxu0 %v1372
    %v1411 = vpop.f32.mrb[0].mxu0
    %v1412 = vadd.f32 %v1359, %v1411
    %v1413 = vpop.f32.mrb[0].mxu0
    %v1414 = vpop.f32.mrb[0].mxu0
    %v1415 = vadd.f32 %v1364, %v1414
    %v1416 = vpop.f32.mrb[0].mxu0
    %1417 = vdwg.mxu0
    %v1418 = vpack.c.bf16 %v1348, %v1347
    %v1420 = vsel %vm885, %v1418, 0
    %1422 = vmatprep.subr.bf16.mxu0 0
    %1423 = vmatpush1.bf16.msra.mxu0 %v1420
    %1424 = vmatprep.subr.bf16.mxu0 0
    %1425 = vmatpush1.bf16.msra.mxu0 0
    %1426 = vmatprep.subr.bf16.mxu0 0
    %1427 = vmatpush1.bf16.msra.mxu0 0
    %1428 = vmatprep.subr.bf16.mxu0 0
    %1429 = vmatpush1.bf16.msra.mxu0 0
    %1430 = vmatprep.subr.bf16.mxu0 0
    %1431 = vmatpush1.bf16.msra.mxu0 0
    %1432 = vmatprep.subr.bf16.mxu0 0
    %1433 = vmatpush1.bf16.msra.mxu0 0
    %1434 = vmatprep.subr.bf16.mxu0 0
    %1435 = vmatpush1.bf16.msra.mxu0 0
    %1436 = vmatprep.subr.bf16.mxu0 0
    %1437 = vmatpush1.bf16.msra.mxu0 0
    %1438 = vmatprep.subr.bf16.mxu0 0
    %1439 = vmatpush1.bf16.msra.mxu0 0
    %1440 = vmatprep.subr.bf16.mxu0 0
    %1441 = vmatpush1.bf16.msra.mxu0 0
    %1442 = vmatprep.subr.bf16.mxu0 0
    %1443 = vmatpush1.bf16.msra.mxu0 0
    %1444 = vmatprep.subr.bf16.mxu0 0
    %1445 = vmatpush1.bf16.msra.mxu0 0
    %1446 = vmatprep.subr.bf16.mxu0 0
    %1447 = vmatpush1.bf16.msra.mxu0 0
    %1448 = vmatprep.subr.bf16.mxu0 0
    %1449 = vmatpush1.bf16.msra.mxu0 0
    %1450 = vmatprep.subr.bf16.mxu0 0
    %1451 = vmatpush1.bf16.msra.mxu0 0
    %1452 = vmatprep.subr.bf16.mxu0 0
    %1453 = vmatpush1.bf16.msra.mxu0 0
    %1454 = vmatprep.mubr.bf16.mxu0 0
    %1455 = vmatmul.mubr.bf16.gmra.mrb[0].mxu0 %v1372
    %v1456 = vpop.f32.mrb[0].mxu0
    %v1457 = vadd.f32 %v1359, %v1456
    %v1458 = vpop.f32.mrb[0].mxu0
    %v1459 = vpop.f32.mrb[0].mxu0
    %v1460 = vadd.f32 %v1364, %v1459
    %v1461 = vpop.f32.mrb[0].mxu0
    %1462 = vdwg.mxu0
    %v1463 = vmax.f32 %v1412, 0.0
    %v1464 = vmax.f32 %v1415, 0.0
    %v1465 = vadd.f32 %v1463, %v1343
    %v1466 = vadd.f32 %v1464, %v1344
    %v1467 = vmax.f32 %v1457, 0.0
    %v1468 = vmax.f32 %v1460, 0.0
    %v1469 = vadd.f32 %v1467, %v1347
    %v1470 = vadd.f32 %v1468, %v1348
    %s1471 = scalar_lea.vmem %s3, 40
    %v1472 = vld [vmem:[%s1471] sm:$0xf]
    %v1473 = vld [vmem:[%s1471 + $0x4] sm:$0x1]
    %s1474 = scalar_lea.vmem %s4, 80
    %v1475 = vld [vmem:[%s1474] sm:$0xff]
    %v1476 = vld [vmem:[%s1474 + $0x8] sm:$0x3]
    %v1477 = vpack.c.bf16 %v1466, %v1465
    %1479 = vset.pattern.permute.xlu0 0
    %1480 = vperm.xlu0 %1479, %v1475
    %v1481 = vpop.permute.xlu0 %1480
    %1484 = vset.pattern.permute.xlu0 0
    %1485 = vperm.xlu0 %1484, %v1476
    %v1486 = vpop.permute.xlu0 %1485
    %v1490 = vunpack.c.l.b16 %v1472
    %v1491 = vunpack.c.l.b16 %v1473
    %v1492 = vpack.c.b16 %v1491, %v1490
    %v1494 = vsel %vm881, %v1492, 0
    %v1497 = vsel %vm885, %v1477, 0
    %1499 = vmatprep.subr.bf16.mxu0 0
    %1500 = vmatpush1.bf16.msra.mxu0 %v1497
    %1501 = vmatprep.subr.bf16.mxu0 0
    %1502 = vmatpush1.bf16.msra.mxu0 0
    %1503 = vmatprep.subr.bf16.mxu0 0
    %1504 = vmatpush1.bf16.msra.mxu0 0
    %1505 = vmatprep.subr.bf16.mxu0 0
    %1506 = vmatpush1.bf16.msra.mxu0 0
    %1507 = vmatprep.subr.bf16.mxu0 0
    %1508 = vmatpush1.bf16.msra.mxu0 0
    %1509 = vmatprep.subr.bf16.mxu0 0
    %1510 = vmatpush1.bf16.msra.mxu0 0
    %1511 = vmatprep.subr.bf16.mxu0 0
    %1512 = vmatpush1.bf16.msra.mxu0 0
    %1513 = vmatprep.subr.bf16.mxu0 0
    %1514 = vmatpush1.bf16.msra.mxu0 0
    %1515 = vmatprep.subr.bf16.mxu0 0
    %1516 = vmatpush1.bf16.msra.mxu0 0
    %1517 = vmatprep.subr.bf16.mxu0 0
    %1518 = vmatpush1.bf16.msra.mxu0 0
    %1519 = vmatprep.subr.bf16.mxu0 0
    %1520 = vmatpush1.bf16.msra.mxu0 0
    %1521 = vmatprep.subr.bf16.mxu0 0
    %1522 = vmatpush1.bf16.msra.mxu0 0
    %1523 = vmatprep.subr.bf16.mxu0 0
    %1524 = vmatpush1.bf16.msra.mxu0 0
    %1525 = vmatprep.subr.bf16.mxu0 0
    %1526 = vmatpush1.bf16.msra.mxu0 0
    %1527 = vmatprep.subr.bf16.mxu0 0
    %1528 = vmatpush1.bf16.msra.mxu0 0
    %1529 = vmatprep.subr.bf16.mxu0 0
    %1530 = vmatpush1.bf16.msra.mxu0 0
    %1531 = vmatprep.mubr.bf16.mxu0 0
    %1532 = vmatmul.mubr.bf16.gmra.mrb[0].mxu0 %v1494
    %v1533 = vpop.f32.mrb[0].mxu0
    %v1534 = vadd.f32 %v1481, %v1533
    %v1535 = vpop.f32.mrb[0].mxu0
    %v1536 = vpop.f32.mrb[0].mxu0
    %v1537 = vadd.f32 %v1486, %v1536
    %v1538 = vpop.f32.mrb[0].mxu0
    %1539 = vdwg.mxu0
    %v1540 = vpack.c.bf16 %v1470, %v1469
    %v1542 = vsel %vm885, %v1540, 0
    %1544 = vmatprep.subr.bf16.mxu0 0
    %1545 = vmatpush1.bf16.msra.mxu0 %v1542
    %1546 = vmatprep.subr.bf16.mxu0 0
    %1547 = vmatpush1.bf16.msra.mxu0 0
    %1548 = vmatprep.subr.bf16.mxu0 0
    %1549 = vmatpush1.bf16.msra.mxu0 0
    %1550 = vmatprep.subr.bf16.mxu0 0
    %1551 = vmatpush1.bf16.msra.mxu0 0
    %1552 = vmatprep.subr.bf16.mxu0 0
    %1553 = vmatpush1.bf16.msra.mxu0 0
    %1554 = vmatprep.subr.bf16.mxu0 0
    %1555 = vmatpush1.bf16.msra.mxu0 0
    %1556 = vmatprep.subr.bf16.mxu0 0
    %1557 = vmatpush1.bf16.msra.mxu0 0
    %1558 = vmatprep.subr.bf16.mxu0 0
    %1559 = vmatpush1.bf16.msra.mxu0 0
    %1560 = vmatprep.subr.bf16.mxu0 0
    %1561 = vmatpush1.bf16.msra.mxu0 0
    %1562 = vmatprep.subr.bf16.mxu0 0
    %1563 = vmatpush1.bf16.msra.mxu0 0
    %1564 = vmatprep.subr.bf16.mxu0 0
    %1565 = vmatpush1.bf16.msra.mxu0 0
    %1566 = vmatprep.subr.bf16.mxu0 0
    %1567 = vmatpush1.bf16.msra.mxu0 0
    %1568 = vmatprep.subr.bf16.mxu0 0
    %1569 = vmatpush1.bf16.msra.mxu0 0
    %1570 = vmatprep.subr.bf16.mxu0 0
    %1571 = vmatpush1.bf16.msra.mxu0 0
    %1572 = vmatprep.subr.bf16.mxu0 0
    %1573 = vmatpush1.bf16.msra.mxu0 0
    %1574 = vmatprep.subr.bf16.mxu0 0
    %1575 = vmatpush1.bf16.msra.mxu0 0
    %1576 = vmatprep.mubr.bf16.mxu0 0
    %1577 = vmatmul.mubr.bf16.gmra.mrb[0].mxu0 %v1494
    %v1578 = vpop.f32.mrb[0].mxu0
    %v1579 = vadd.f32 %v1481, %v1578
    %v1580 = vpop.f32.mrb[0].mxu0
    %v1581 = vpop.f32.mrb[0].mxu0
    %v1582 = vadd.f32 %v1486, %v1581
    %v1583 = vpop.f32.mrb[0].mxu0
    %1584 = vdwg.mxu0
    %v1585 = vmax.f32 %v1534, 0.0
    %v1586 = vmax.f32 %v1537, 0.0
    %v1587 = vadd.f32 %v1585, %v1465
    %v1588 = vadd.f32 %v1586, %v1466
    %v1589 = vmax.f32 %v1579, 0.0
    %v1590 = vmax.f32 %v1582, 0.0
    %v1591 = vadd.f32 %v1589, %v1469
    %v1592 = vadd.f32 %v1590, %v1470
    %s1593 = scalar_lea.vmem %s3, 48
    %v1594 = vld [vmem:[%s1593] sm:$0xf]
    %v1595 = vld [vmem:[%s1593 + $0x4] sm:$0x1]
    %s1596 = scalar_lea.vmem %s4, 96
    %v1597 = vld [vmem:[%s1596] sm:$0xff]
    %v1598 = vld [vmem:[%s1596 + $0x8] sm:$0x3]
    %v1599 = vpack.c.bf16 %v1588, %v1587
    %1601 = vset.pattern.permute.xlu0 0
    %1602 = vperm.xlu0 %1601, %v1597
    %v1603 = vpop.permute.xlu0 %1602
    %1606 = vset.pattern.permute.xlu0 0
    %1607 = vperm.xlu0 %1606, %v1598
    %v1608 = vpop.permute.xlu0 %1607
    %v1612 = vunpack.c.l.b16 %v1594
    %v1613 = vunpack.c.l.b16 %v1595
    %v1614 = vpack.c.b16 %v1613, %v1612
    %v1616 = vsel %vm881, %v1614, 0
    %v1619 = vsel %vm885, %v1599, 0
    %1621 = vmatprep.subr.bf16.mxu0 0
    %1622 = vmatpush1.bf16.msra.mxu0 %v1619
    %1623 = vmatprep.subr.bf16.mxu0 0
    %1624 = vmatpush1.bf16.msra.mxu0 0
    %1625 = vmatprep.subr.bf16.mxu0 0
    %1626 = vmatpush1.bf16.msra.mxu0 0
    %1627 = vmatprep.subr.bf16.mxu0 0
    %1628 = vmatpush1.bf16.msra.mxu0 0
    %1629 = vmatprep.subr.bf16.mxu0 0
    %1630 = vmatpush1.bf16.msra.mxu0 0
    %1631 = vmatprep.subr.bf16.mxu0 0
    %1632 = vmatpush1.bf16.msra.mxu0 0
    %1633 = vmatprep.subr.bf16.mxu0 0
    %1634 = vmatpush1.bf16.msra.mxu0 0
    %1635 = vmatprep.subr.bf16.mxu0 0
    %1636 = vmatpush1.bf16.msra.mxu0 0
    %1637 = vmatprep.subr.bf16.mxu0 0
    %1638 = vmatpush1.bf16.msra.mxu0 0
    %1639 = vmatprep.subr.bf16.mxu0 0
    %1640 = vmatpush1.bf16.msra.mxu0 0
    %1641 = vmatprep.subr.bf16.mxu0 0
    %1642 = vmatpush1.bf16.msra.mxu0 0
    %1643 = vmatprep.subr.bf16.mxu0 0
    %1644 = vmatpush1.bf16.msra.mxu0 0
    %1645 = vmatprep.subr.bf16.mxu0 0
    %1646 = vmatpush1.bf16.msra.mxu0 0
    %1647 = vmatprep.subr.bf16.mxu0 0
    %1648 = vmatpush1.bf16.msra.mxu0 0
    %1649 = vmatprep.subr.bf16.mxu0 0
    %1650 = vmatpush1.bf16.msra.mxu0 0
    %1651 = vmatprep.subr.bf16.mxu0 0
    %1652 = vmatpush1.bf16.msra.mxu0 0
    %1653 = vmatprep.mubr.bf16.mxu0 0
    %1654 = vmatmul.mubr.bf16.gmra.mrb[0].mxu0 %v1616
    %v1655 = vpop.f32.mrb[0].mxu0
    %v1656 = vadd.f32 %v1603, %v1655
    %v1657 = vpop.f32.mrb[0].mxu0
    %v1658 = vpop.f32.mrb[0].mxu0
    %v1659 = vadd.f32 %v1608, %v1658
    %v1660 = vpop.f32.mrb[0].mxu0
    %1661 = vdwg.mxu0
    %v1662 = vpack.c.bf16 %v1592, %v1591
    %v1664 = vsel %vm885, %v1662, 0
    %1666 = vmatprep.subr.bf16.mxu0 0
    %1667 = vmatpush1.bf16.msra.mxu0 %v1664
    %1668 = vmatprep.subr.bf16.mxu0 0
    %1669 = vmatpush1.bf16.msra.mxu0 0
    %1670 = vmatprep.subr.bf16.mxu0 0
    %1671 = vmatpush1.bf16.msra.mxu0 0
    %1672 = vmatprep.subr.bf16.mxu0 0
    %1673 = vmatpush1.bf16.msra.mxu0 0
    %1674 = vmatprep.subr.bf16.mxu0 0
    %1675 = vmatpush1.bf16.msra.mxu0 0
    %1676 = vmatprep.subr.bf16.mxu0 0
    %1677 = vmatpush1.bf16.msra.mxu0 0
    %1678 = vmatprep.subr.bf16.mxu0 0
    %1679 = vmatpush1.bf16.msra.mxu0 0
    %1680 = vmatprep.subr.bf16.mxu0 0
    %1681 = vmatpush1.bf16.msra.mxu0 0
    %1682 = vmatprep.subr.bf16.mxu0 0
    %1683 = vmatpush1.bf16.msra.mxu0 0
    %1684 = vmatprep.subr.bf16.mxu0 0
    %1685 = vmatpush1.bf16.msra.mxu0 0
    %1686 = vmatprep.subr.bf16.mxu0 0
    %1687 = vmatpush1.bf16.msra.mxu0 0
    %1688 = vmatprep.subr.bf16.mxu0 0
    %1689 = vmatpush1.bf16.msra.mxu0 0
    %1690 = vmatprep.subr.bf16.mxu0 0
    %1691 = vmatpush1.bf16.msra.mxu0 0
    %1692 = vmatprep.subr.bf16.mxu0 0
    %1693 = vmatpush1.bf16.msra.mxu0 0
    %1694 = vmatprep.subr.bf16.mxu0 0
    %1695 = vmatpush1.bf16.msra.mxu0 0
    %1696 = vmatprep.subr.bf16.mxu0 0
    %1697 = vmatpush1.bf16.msra.mxu0 0
    %1698 = vmatprep.mubr.bf16.mxu0 0
    %1699 = vmatmul.mubr.bf16.gmra.mrb[0].mxu0 %v1616
    %v1700 = vpop.f32.mrb[0].mxu0
    %v1701 = vadd.f32 %v1603, %v1700
    %v1702 = vpop.f32.mrb[0].mxu0
    %v1703 = vpop.f32.mrb[0].mxu0
    %v1704 = vadd.f32 %v1608, %v1703
    %v1705 = vpop.f32.mrb[0].mxu0
    %1706 = vdwg.mxu0
    %v1707 = vmax.f32 %v1656, 0.0
    %v1708 = vmax.f32 %v1659, 0.0
    %v1709 = vadd.f32 %v1707, %v1587
    %v1710 = vadd.f32 %v1708, %v1588
    %v1711 = vmax.f32 %v1701, 0.0
    %v1712 = vmax.f32 %v1704, 0.0
    %v1713 = vadd.f32 %v1711, %v1591
    %v1714 = vadd.f32 %v1712, %v1592
    %s1715 = scalar_lea.vmem %s3, 56
    %v1716 = vld [vmem:[%s1715] sm:$0xf]
    %v1717 = vld [vmem:[%s1715 + $0x4] sm:$0x1]
    %s1718 = scalar_lea.vmem %s4, 112
    %v1719 = vld [vmem:[%s1718] sm:$0xff]
    %v1720 = vld [vmem:[%s1718 + $0x8] sm:$0x3]
    %v1721 = vpack.c.bf16 %v1710, %v1709
    %1723 = vset.pattern.permute.xlu0 0
    %1724 = vperm.xlu0 %1723, %v1719
    %v1725 = vpop.permute.xlu0 %1724
    %1728 = vset.pattern.permute.xlu0 0
    %1729 = vperm.xlu0 %1728, %v1720
    %v1730 = vpop.permute.xlu0 %1729
    %v1734 = vunpack.c.l.b16 %v1716
    %v1735 = vunpack.c.l.b16 %v1717
    %v1736 = vpack.c.b16 %v1735, %v1734
    %v1738 = vsel %vm881, %v1736, 0
    %v1741 = vsel %vm885, %v1721, 0
    %1743 = vmatprep.subr.bf16.mxu0 0
    %1744 = vmatpush1.bf16.msra.mxu0 %v1741
    %1745 = vmatprep.subr.bf16.mxu0 0
    %1746 = vmatpush1.bf16.msra.mxu0 0
    %1747 = vmatprep.subr.bf16.mxu0 0
    %1748 = vmatpush1.bf16.msra.mxu0 0
    %1749 = vmatprep.subr.bf16.mxu0 0
    %1750 = vmatpush1.bf16.msra.mxu0 0
    %1751 = vmatprep.subr.bf16.mxu0 0
    %1752 = vmatpush1.bf16.msra.mxu0 0
    %1753 = vmatprep.subr.bf16.mxu0 0
    %1754 = vmatpush1.bf16.msra.mxu0 0
    %1755 = vmatprep.subr.bf16.mxu0 0
    %1756 = vmatpush1.bf16.msra.mxu0 0
    %1757 = vmatprep.subr.bf16.mxu0 0
    %1758 = vmatpush1.bf16.msra.mxu0 0
    %1759 = vmatprep.subr.bf16.mxu0 0
    %1760 = vmatpush1.bf16.msra.mxu0 0
    %1761 = vmatprep.subr.bf16.mxu0 0
    %1762 = vmatpush1.bf16.msra.mxu0 0
    %1763 = vmatprep.subr.bf16.mxu0 0
    %1764 = vmatpush1.bf16.msra.mxu0 0
    %1765 = vmatprep.subr.bf16.mxu0 0
    %1766 = vmatpush1.bf16.msra.mxu0 0
    %1767 = vmatprep.subr.bf16.mxu0 0
    %1768 = vmatpush1.bf16.msra.mxu0 0
    %1769 = vmatprep.subr.bf16.mxu0 0
    %1770 = vmatpush1.bf16.msra.mxu0 0
    %1771 = vmatprep.subr.bf16.mxu0 0
    %1772 = vmatpush1.bf16.msra.mxu0 0
    %1773 = vmatprep.subr.bf16.mxu0 0
    %1774 = vmatpush1.bf16.msra.mxu0 0
    %1775 = vmatprep.mubr.bf16.mxu0 0
    %1776 = vmatmul.mubr.bf16.gmra.mrb[0].mxu0 %v1738
    %v1777 = vpop.f32.mrb[0].mxu0
    %v1778 = vadd.f32 %v1725, %v1777
    %v1779 = vpop.f32.mrb[0].mxu0
    %v1780 = vpop.f32.mrb[0].mxu0
    %v1781 = vadd.f32 %v1730, %v1780
    %v1782 = vpop.f32.mrb[0].mxu0
    %1783 = vdwg.mxu0
    %v1784 = vpack.c.bf16 %v1714, %v1713
    %v1786 = vsel %vm885, %v1784, 0
    %1788 = vmatprep.subr.bf16.mxu0 0
    %1789 = vmatpush1.bf16.msra.mxu0 %v1786
    %1790 = vmatprep.subr.bf16.mxu0 0
    %1791 = vmatpush1.bf16.msra.mxu0 0
    %1792 = vmatprep.subr.bf16.mxu0 0
    %1793 = vmatpush1.bf16.msra.mxu0 0
    %1794 = vmatprep.subr.bf16.mxu0 0
    %1795 = vmatpush1.bf16.msra.mxu0 0
    %1796 = vmatprep.subr.bf16.mxu0 0
    %1797 = vmatpush1.bf16.msra.mxu0 0
    %1798 = vmatprep.subr.bf16.mxu0 0
    %1799 = vmatpush1.bf16.msra.mxu0 0
    %1800 = vmatprep.subr.bf16.mxu0 0
    %1801 = vmatpush1.bf16.msra.mxu0 0
    %1802 = vmatprep.subr.bf16.mxu0 0
    %1803 = vmatpush1.bf16.msra.mxu0 0
    %1804 = vmatprep.subr.bf16.mxu0 0
    %1805 = vmatpush1.bf16.msra.mxu0 0
    %1806 = vmatprep.subr.bf16.mxu0 0
    %1807 = vmatpush1.bf16.msra.mxu0 0
    %1808 = vmatprep.subr.bf16.mxu0 0
    %1809 = vmatpush1.bf16.msra.mxu0 0
    %1810 = vmatprep.subr.bf16.mxu0 0
    %1811 = vmatpush1.bf16.msra.mxu0 0
    %1812 = vmatprep.subr.bf16.mxu0 0
    %1813 = vmatpush1.bf16.msra.mxu0 0
    %1814 = vmatprep.subr.bf16.mxu0 0
    %1815 = vmatpush1.bf16.msra.mxu0 0
    %1816 = vmatprep.subr.bf16.mxu0 0
    %1817 = vmatpush1.bf16.msra.mxu0 0
    %1818 = vmatprep.subr.bf16.mxu0 0
    %1819 = vmatpush1.bf16.msra.mxu0 0
    %1820 = vmatprep.mubr.bf16.mxu0 0
    %1821 = vmatmul.mubr.bf16.gmra.mrb[0].mxu0 %v1738
    %v1822 = vpop.f32.mrb[0].mxu0
    %v1823 = vadd.f32 %v1725, %v1822
    %v1824 = vpop.f32.mrb[0].mxu0
    %v1825 = vpop.f32.mrb[0].mxu0
    %v1826 = vadd.f32 %v1730, %v1825
    %v1827 = vpop.f32.mrb[0].mxu0
    %1828 = vdwg.mxu0
    %v1829 = vmax.f32 %v1778, 0.0
    %v1830 = vmax.f32 %v1781, 0.0
    %v1831 = vadd.f32 %v1829, %v1709
    %v1832 = vadd.f32 %v1830, %v1710
    %v1833 = vmax.f32 %v1823, 0.0
    %v1834 = vmax.f32 %v1826, 0.0
    %v1835 = vadd.f32 %v1833, %v1713
    %v1836 = vadd.f32 %v1834, %v1714
    %v1837 = vld [vmem:[%s5] sm:$0xf]
    %v1838 = vld [vmem:[%s5 + $0x4] sm:$0x1]
    %v1839 = vld [vmem:[%s6] sm:$0xff]
    %v1840 = vld [vmem:[%s6 + $0x8] sm:$0x3]
    %v1841 = vpack.c.bf16 %v1832, %v1831
    %1843 = vset.pattern.permute.xlu0 0
    %1844 = vperm.xlu0 %1843, %v1839
    %v1845 = vpop.permute.xlu0 %1844
    %1848 = vset.pattern.permute.xlu0 0
    %1849 = vperm.xlu0 %1848, %v1840
    %v1850 = vpop.permute.xlu0 %1849
    %v1854 = vunpack.c.l.b16 %v1837
    %v1855 = vunpack.c.l.b16 %v1838
    %v1856 = vpack.c.b16 %v1855, %v1854
    %v1858 = vsel %vm881, %v1856, 0
    %v1861 = vsel %vm885, %v1841, 0
    %1863 = vmatprep.subr.bf16.mxu0 0
    %1864 = vmatpush1.bf16.msra.mxu0 %v1861
    %1865 = vmatprep.subr.bf16.mxu0 0
    %1866 = vmatpush1.bf16.msra.mxu0 0
    %1867 = vmatprep.subr.bf16.mxu0 0
    %1868 = vmatpush1.bf16.msra.mxu0 0
    %1869 = vmatprep.subr.bf16.mxu0 0
    %1870 = vmatpush1.bf16.msra.mxu0 0
    %1871 = vmatprep.subr.bf16.mxu0 0
    %1872 = vmatpush1.bf16.msra.mxu0 0
    %1873 = vmatprep.subr.bf16.mxu0 0
    %1874 = vmatpush1.bf16.msra.mxu0 0
    %1875 = vmatprep.subr.bf16.mxu0 0
    %1876 = vmatpush1.bf16.msra.mxu0 0
    %1877 = vmatprep.subr.bf16.mxu0 0
    %1878 = vmatpush1.bf16.msra.mxu0 0
    %1879 = vmatprep.subr.bf16.mxu0 0
    %1880 = vmatpush1.bf16.msra.mxu0 0
    %1881 = vmatprep.subr.bf16.mxu0 0
    %1882 = vmatpush1.bf16.msra.mxu0 0
    %1883 = vmatprep.subr.bf16.mxu0 0
    %1884 = vmatpush1.bf16.msra.mxu0 0
    %1885 = vmatprep.subr.bf16.mxu0 0
    %1886 = vmatpush1.bf16.msra.mxu0 0
    %1887 = vmatprep.subr.bf16.mxu0 0
    %1888 = vmatpush1.bf16.msra.mxu0 0
    %1889 = vmatprep.subr.bf16.mxu0 0
    %1890 = vmatpush1.bf16.msra.mxu0 0
    %1891 = vmatprep.subr.bf16.mxu0 0
    %1892 = vmatpush1.bf16.msra.mxu0 0
    %1893 = vmatprep.subr.bf16.mxu0 0
    %1894 = vmatpush1.bf16.msra.mxu0 0
    %1895 = vmatprep.mubr.bf16.mxu0 0
    %1896 = vmatmul.mubr.bf16.gmra.mrb[0].mxu0 %v1858
    %v1897 = vpop.f32.mrb[0].mxu0
    %v1898 = vadd.f32 %v1845, %v1897
    %v1899 = vpop.f32.mrb[0].mxu0
    %v1900 = vpop.f32.mrb[0].mxu0
    %v1901 = vadd.f32 %v1850, %v1900
    %v1902 = vpop.f32.mrb[0].mxu0
    %1903 = vdwg.mxu0
    %v1904 = vpack.c.bf16 %v1836, %v1835
    %v1906 = vsel %vm885, %v1904, 0
    %1908 = vmatprep.subr.bf16.mxu0 0
    %1909 = vmatpush1.bf16.msra.mxu0 %v1906
    %1910 = vmatprep.subr.bf16.mxu0 0
    %1911 = vmatpush1.bf16.msra.mxu0 0
    %1912 = vmatprep.subr.bf16.mxu0 0
    %1913 = vmatpush1.bf16.msra.mxu0 0
    %1914 = vmatprep.subr.bf16.mxu0 0
    %1915 = vmatpush1.bf16.msra.mxu0 0
    %1916 = vmatprep.subr.bf16.mxu0 0
    %1917 = vmatpush1.bf16.msra.mxu0 0
    %1918 = vmatprep.subr.bf16.mxu0 0
    %1919 = vmatpush1.bf16.msra.mxu0 0
    %1920 = vmatprep.subr.bf16.mxu0 0
    %1921 = vmatpush1.bf16.msra.mxu0 0
    %1922 = vmatprep.subr.bf16.mxu0 0
    %1923 = vmatpush1.bf16.msra.mxu0 0
    %1924 = vmatprep.subr.bf16.mxu0 0
    %1925 = vmatpush1.bf16.msra.mxu0 0
    %1926 = vmatprep.subr.bf16.mxu0 0
    %1927 = vmatpush1.bf16.msra.mxu0 0
    %1928 = vmatprep.subr.bf16.mxu0 0
    %1929 = vmatpush1.bf16.msra.mxu0 0
    %1930 = vmatprep.subr.bf16.mxu0 0
    %1931 = vmatpush1.bf16.msra.mxu0 0
    %1932 = vmatprep.subr.bf16.mxu0 0
    %1933 = vmatpush1.bf16.msra.mxu0 0
    %1934 = vmatprep.subr.bf16.mxu0 0
    %1935 = vmatpush1.bf16.msra.mxu0 0
    %1936 = vmatprep.subr.bf16.mxu0 0
    %1937 = vmatpush1.bf16.msra.mxu0 0
    %1938 = vmatprep.subr.bf16.mxu0 0
    %1939 = vmatpush1.bf16.msra.mxu0 0
    %1940 = vmatprep.mubr.bf16.mxu0 0
    %1941 = vmatmul.mubr.bf16.gmra.mrb[0].mxu0 %v1858
    %v1942 = vpop.f32.mrb[0].mxu0
    %v1943 = vadd.f32 %v1845, %v1942
    %v1944 = vpop.f32.mrb[0].mxu0
    %v1945 = vpop.f32.mrb[0].mxu0
    %v1946 = vadd.f32 %v1850, %v1945
    %v1947 = vpop.f32.mrb[0].mxu0
    %1948 = vdwg.mxu0
    %v1949 = vmax.f32 %v1898, 0.0
    %v1950 = vmax.f32 %v1901, 0.0
    %1951 = vst [vmem:[#allocation5] sm:$0xff] %v1949
    %1952 = vst [vmem:[#allocation5 + $0x10] sm:$0x3] %v1950
    %v1953 = vmax.f32 %v1943, 0.0
    %v1954 = vmax.f32 %v1946, 0.0
    %1955 = vst [vmem:[#allocation5 + $0x8] sm:$0xff] %v1953
    %1956 = vst [vmem:[#allocation5 + $0x18] sm:$0x3] %v1954
    // Predicated region
    $region34: #{tpu_custom_call.1} parent=1 // pred_check
      _
    $region35: #{tpu_custom_call.1} parent=1 // pred_check_branch
      %1958 = sbr.rel (0) target = $region37
    $region36: #{tpu_custom_call.1} parent=1 // pred_region
      %s1960 = ssub.s32 512, 512
      %1961 = vsyncadd [#allocation4], %s1960
      %s1962 = sshll.u32 [#allocation5], 4
      %s1963 = int_to_ptr.vmem [resolvable:$true] %s1962
      %1968 = dma.vmem_to_hbm [thread:$0]  %s1963, 512, %s7, [#allocation4], 256, 256, 16
    $region37: #{tpu_custom_call.1} parent=1 // pred_fallthru
      _
    // Predicated region
    $region38: #{tpu_custom_call.1} parent=1 // pred_check
      _
    $region39: #{tpu_custom_call.1} parent=1 // pred_check_branch
      %1970 = sbr.rel (0) target = $region41
    $region40: #{tpu_custom_call.1} parent=1 // pred_region
      %1971 = dma.done [#allocation4], 512
    $region41: #{tpu_custom_call.1} parent=1 // pred_fallthru
      _
    %1972 = vsyncpa [#allocation3], 1
    %1973 = vsyncpa [#allocation4], 1

</llo_original>
